<compile_context>
chip_gen: v7x
topology: tpu7x:2x2x1
jax: 0.10.0
libtpu: 0.0.40
codegen_flags: <defaults>
</compile_context>

<pallas_src>
import functools

import jax
import jax.numpy as jnp
import numpy as np
from jax import lax
from jax.experimental import pallas as pl
from jax.experimental.pallas import tpu as pltpu

_LANE = 128      # lane width == channel register block
_TH = 8          # output rows per grid step
_TW = 16         # output cols per register tile (= bf16 sublane tile)


def _round_up(x, m):
    return (x + m - 1) // m * m


def _x_storage_dtype():
    """bf16 image on chips with a bf16 VPU (v6e / v7x); f32 otherwise (v5e)."""
    try:
        kind = jax.devices()[0].device_kind.lower()
    except Exception:
        return jnp.float32
    if any(t in kind for t in ("v6", "v7", "7x")):
        return jnp.bfloat16
    return jnp.float32


def _vmem_capacity_bytes():
    try:
        return int(pltpu.get_tpu_info().vmem_capacity_bytes)
    except Exception:
        pass
    try:
        kind = jax.devices()[0].device_kind.lower()
    except Exception:
        kind = ""
    if "7" in kind:            # v7x: 64 MiB per TensorCore
        return 64 << 20
    return 128 << 20           # v5e / v6e


def _asc_kernel(x_ref, wdw_ref, bdw_ref, wpw_ref, bpw_ref, o_ref, acc_ref,
                *, ksize, stride, dilation, th, tw, cblk):
    """One grid step = (batch element b, output-row tile hh).

    x_ref  : (1, Hp, Wp, Cinp)     padded NHWC image (VMEM-resident across hh)
    wdw_ref: (K*K, 1, Cinp) f32    depthwise weights, one (1, Cinp) row per tap
    bdw_ref: (1, Cinp) f32         depthwise bias
    wpw_ref: (Cinp, Coutp) bf16    pointwise (1x1) weights
    bpw_ref: (1, Coutp) f32        pointwise bias
    o_ref  : (1, TH, Wop, Coutp)   output row strip
    acc_ref: (TH, Wop, Cinp) bf16  depthwise result; doubles as the MXU LHS
    """
    hh = pl.program_id(1)
    _, _, wo_p, coutp = o_ref.shape
    cinp = x_ref.shape[-1]

    row0 = pl.multiple_of(hh * (th * stride), th * stride)
    n_wt = wo_p // tw
    n_ct = cinp // cblk

    # ---- depthwise atrous conv: register accumulation, single bf16 store ---
    # TODO(synk): for very wide images (large n_wt) switch the wt loop to
    # lax.fori_loop to bound the unrolled program size.
    for ct in range(n_ct):
        c0 = ct * cblk
        bias_c = bdw_ref[:, pl.ds(c0, cblk)]                        # (1, cblk)
        taps = [wdw_ref[t, :, pl.ds(c0, cblk)]                       # (1, cblk)
                for t in range(ksize * ksize)]
        for wt in range(n_wt):
            col0 = wt * (tw * stride)
            acc = None
            for kh in range(ksize):
                for kw in range(ksize):
                    if stride == 1:
                        win = x_ref[0,
                                    pl.ds(row0 + kh * dilation, th),
                                    pl.ds(col0 + kw * dilation, tw),
                                    pl.ds(c0, cblk)]
                    else:
                        win = x_ref[0,
                                    pl.ds(row0 + kh * dilation, th, stride),
                                    pl.ds(col0 + kw * dilation, tw, stride),
                                    pl.ds(c0, cblk)]
                    contrib = win.astype(jnp.float32) * taps[kh * ksize + kw]
                    acc = contrib if acc is None else acc + contrib
            acc = acc + bias_c
            acc_ref[:, pl.ds(wt * tw, tw), pl.ds(c0, cblk)] = (
                acc.astype(acc_ref.dtype))

    # ---- pointwise 1x1 conv: lane-dense MXU matmul, bf16 in / f32 acc ------
    y = jnp.dot(acc_ref[...].reshape(th * wo_p, cinp), wpw_ref[...],
                preferred_element_type=jnp.float32)
    y = y + bpw_ref[...]
    o_ref[0] = y.reshape(th, wo_p, coutp).astype(o_ref.dtype)


def atrous_separable_conv_nhwc(x_nhwc, w_dw, b_dw, w_pw, b_pw,
                               *, stride=1, padding=0, dilation=1):
    """NHWC entry point.

    x_nhwc: (N, H, W, Cin) float32
    w_dw  : (Cin, 1, K, K)    depthwise conv weight (PyTorch layout)
    b_dw  : (Cin,)            depthwise conv bias
    w_pw  : (Cout, Cin, 1, 1) pointwise conv weight (PyTorch layout)
    b_pw  : (Cout,)           pointwise conv bias
    returns (N, Ho, Wo, Cout) float32
    """
    n, h, w, cin = x_nhwc.shape
    cout = w_pw.shape[0]
    k = w_dw.shape[-1]

    ho = (h + 2 * padding - dilation * (k - 1) - 1) // stride + 1
    wo = (w + 2 * padding - dilation * (k - 1) - 1) // stride + 1

    cinp = _round_up(cin, _LANE)
    coutp = _round_up(cout, _LANE)
    th, tw, cblk = _TH, _TW, _LANE
    ho_p = _round_up(ho, th)          # padded output rows (cdiv grid)
    wo_p = _round_up(wo, tw)          # padded output cols (bf16 sublane tile)

    # Input extent needed to produce the padded (ho_p, wo_p) output.
    hp = max(h + 2 * padding, (ho_p - 1) * stride + (k - 1) * dilation + 1)
    wp = max(w + 2 * padding, (wo_p - 1) * stride + (k - 1) * dilation + 1)

    x_dtype = _x_storage_dtype()
    x_pad = jnp.pad(x_nhwc.astype(jnp.float32),
                    ((0, 0),
                     (padding, hp - h - padding),
                     (padding, wp - w - padding),
                     (0, cinp - cin))).astype(x_dtype)

    # Weight plumbing done once in the wrapper (not per tap in the kernel).
    wdw = jnp.transpose(w_dw[:, 0], (1, 2, 0))                      # (K,K,Cin)
    wdw = jnp.pad(wdw, ((0, 0), (0, 0), (0, cinp - cin)))
    wdw = wdw.reshape(k * k, 1, cinp).astype(jnp.float32)           # (K*K,1,Cinp)
    bdw = jnp.pad(b_dw, (0, cinp - cin)).reshape(1, cinp).astype(jnp.float32)
    wpw = jnp.transpose(w_pw[:, :, 0, 0], (1, 0))                   # (Cin,Cout)
    wpw = jnp.pad(wpw, ((0, cinp - cin), (0, coutp - cout))).astype(jnp.bfloat16)
    bpw = jnp.pad(b_pw, (0, coutp - cout)).reshape(1, coutp).astype(jnp.float32)

    kernel = functools.partial(_asc_kernel, ksize=k, stride=stride,
                               dilation=dilation, th=th, tw=tw, cblk=cblk)

    x_bytes = jnp.dtype(x_dtype).itemsize
    vmem_cap = max(_vmem_capacity_bytes() - (12 << 20), 16 << 20)
    # Force any megacore split onto the batch axis when n > 1: the x block
    # index is constant along hh, so splitting hh would make both cores hold
    # the SAME image.
    dims = ("parallel", "parallel") if n == 1 else ("parallel", "arbitrary")

    def build(single_buffered):
        def spec(shape, imap, constant_block):
            if single_buffered and constant_block:
                return pl.BlockSpec(shape, imap, pipeline_mode=pl.Buffered(1))
            return pl.BlockSpec(shape, imap)

        nb = 1 if single_buffered else 2
        est = (hp * wp * cinp * x_bytes * nb              # resident image
               + (k * k * cinp + cinp + coutp) * 4 * nb   # f32 weights/biases
               + cinp * coutp * 2 * nb                    # bf16 pw weights
               + th * wo_p * coutp * 4 * 2                # output (2 buffers)
               + th * wo_p * cinp * 2)                    # bf16 scratch
        vmem_limit = int(min(max(int(est * 1.25) + (4 << 20), 16 << 20),
                             vmem_cap))

        return pl.pallas_call(
            kernel,
            out_shape=jax.ShapeDtypeStruct((n, ho_p, wo_p, coutp), jnp.float32),
            grid_spec=pltpu.PrefetchScalarGridSpec(
                num_scalar_prefetch=0,
                grid=(n, ho_p // th),
                in_specs=[
                    # Whole padded image: block index is constant along hh, so
                    # it stays VMEM-resident (no re-DMA per row tile).
                    spec((1, hp, wp, cinp), lambda b, hh: (b, 0, 0, 0), True),
                    spec((k * k, 1, cinp), lambda b, hh: (0, 0, 0), True),
                    spec((1, cinp), lambda b, hh: (0, 0), True),
                    spec((cinp, coutp), lambda b, hh: (0, 0), True),
                    spec((1, coutp), lambda b, hh: (0, 0), True),
                ],
                out_specs=pl.BlockSpec((1, th, wo_p, coutp),
                                       lambda b, hh: (b, hh, 0, 0)),
                scratch_shapes=[pltpu.VMEM((th, wo_p, cinp), jnp.bfloat16)],
            ),
            compiler_params=pltpu.CompilerParams(
                dimension_semantics=dims,
                vmem_limit_bytes=vmem_limit),
        )

    try:
        out_nhwc = build(True)(x_pad, wdw, bdw, wpw, bpw)
    except Exception:
        # Fallback for Pallas builds without BlockSpec pipeline_mode support.
        out_nhwc = build(False)(x_pad, wdw, bdw, wpw, bpw)

    return out_nhwc[:, :ho, :wo, :cout]


def atrous_separable_conv(x_nchw, w_dw, b_dw, w_pw, b_pw,
                          *, stride=1, padding=0, dilation=1):
    """NCHW wrapper matching the PyTorch module interface."""
    x_nhwc = jnp.transpose(x_nchw, (0, 2, 3, 1))
    out_nhwc = atrous_separable_conv_nhwc(x_nhwc, w_dw, b_dw, w_pw, b_pw,
                                          stride=stride, padding=padding,
                                          dilation=dilation)
    return jnp.transpose(out_nhwc, (0, 3, 1, 2))


def _reference(x_nchw, w_dw, b_dw, w_pw, b_pw, *, stride, padding, dilation):
    cin = x_nchw.shape[1]
    y = lax.conv_general_dilated(
        x_nchw, w_dw, window_strides=(stride, stride),
        padding=[(padding, padding), (padding, padding)],
        rhs_dilation=(dilation, dilation),
        dimension_numbers=("NCHW", "OIHW", "NCHW"),
        feature_group_count=cin,
        precision=lax.Precision.HIGHEST)
    y = y + b_dw[None, :, None, None]
    z = lax.conv_general_dilated(
        y, w_pw, window_strides=(1, 1), padding=[(0, 0), (0, 0)],
        dimension_numbers=("NCHW", "OIHW", "NCHW"),
        precision=lax.Precision.HIGHEST)
    return z + b_pw[None, :, None, None]


if __name__ == "__main__":
    # Small shapes consistent with the module: batch=2, in=4, out=8, 16x16,
    # 3x3 kernel, stride=1, padding=2, dilation=2 (atrous).
    N, CIN, COUT, H, W = 2, 4, 8, 16, 16
    K, STRIDE, PADDING, DILATION = 3, 1, 2, 2

    key = jax.random.PRNGKey(0)
    k1, k2, k3, k4, k5 = jax.random.split(key, 5)

    x = jax.random.normal(k1, (N, CIN, H, W), jnp.float32)

    # Deterministic kaiming-normal-style init (std = sqrt(2 / fan_in)).
    w_dw = jax.random.normal(k2, (CIN, 1, K, K), jnp.float32) * np.sqrt(2.0 / (K * K))
    b_dw = jax.random.uniform(k3, (CIN,), jnp.float32, -0.1, 0.1)
    w_pw = jax.random.normal(k4, (COUT, CIN, 1, 1), jnp.float32) * np.sqrt(2.0 / CIN)
    b_pw = jax.random.uniform(k5, (COUT,), jnp.float32, -0.1, 0.1)

    out = atrous_separable_conv(x, w_dw, b_dw, w_pw, b_pw,
                                stride=STRIDE, padding=PADDING,
                                dilation=DILATION)
    out = jax.block_until_ready(out)

    ref = _reference(x, w_dw, b_dw, w_pw, b_pw,
                     stride=STRIDE, padding=PADDING, dilation=DILATION)
    # Tolerance relaxed vs. the f32 reference: the pointwise MXU operands are
    # bf16 (f32 accumulation) and x may be stored bf16 on v6e/v7x.
    np.testing.assert_allclose(np.asarray(out), np.asarray(ref),
                               rtol=2e-2, atol=5e-2)
    print("KERNEL_OK")
</pallas_src>

<mosaic_0001>
module attributes {stable_mosaic.version = 11 : i64} {
  func.func @_asc_kernel(%arg0: i32, %arg1: i32, %arg2: memref<1x20x20x128xf32, #tpu.memory_space<vmem>>, %arg3: memref<9x1x128xf32, #tpu.memory_space<vmem>>, %arg4: memref<1x128xf32, #tpu.memory_space<vmem>>, %arg5: memref<128x128xbf16, #tpu.memory_space<vmem>>, %arg6: memref<1x128xf32, #tpu.memory_space<vmem>>, %arg7: memref<1x8x16x128xf32, #tpu.memory_space<vmem>>, %arg8: memref<8x16x128xbf16, #tpu.memory_space<vmem>>) attributes {dimension_semantics = [#tpu.dimension_semantics<parallel>, #tpu.dimension_semantics<arbitrary>], iteration_bounds = array<i64: 2, 2>, scalar_prefetch = 0 : i64, scratch_operands = 1 : i64, tpu.core_type = #tpu.core_type<tc>, window_params = [{pipeline_mode = #tpu.pipeline_mode<synchronous>, transform_indices = @transform_0, window_bounds = array<i64: 1, 20, 20, 128>}, {pipeline_mode = #tpu.pipeline_mode<synchronous>, transform_indices = @transform_1, window_bounds = array<i64: 9, 1, 128>}, {pipeline_mode = #tpu.pipeline_mode<synchronous>, transform_indices = @transform_2, window_bounds = array<i64: 1, 128>}, {pipeline_mode = #tpu.pipeline_mode<synchronous>, transform_indices = @transform_3, window_bounds = array<i64: 128, 128>}, {pipeline_mode = #tpu.pipeline_mode<synchronous>, transform_indices = @transform_4, window_bounds = array<i64: 1, 128>}, {transform_indices = @transform_5, window_bounds = array<i64: 1, 8, 16, 128>}]} {
    %c8_i32 = arith.constant 8 : i32
    %0 = arith.muli %arg1, %c8_i32 : i32
    %1 = tpu.assume_multiple %0, 8 : i32
    %c0 = arith.constant 0 : index
    %c0_0 = arith.constant 0 : index
    %2 = vector.load %arg4[%c0, %c0_0] : memref<1x128xf32, #tpu.memory_space<vmem>>, vector<1x128xf32>
    %c0_1 = arith.constant 0 : index
    %c0_2 = arith.constant 0 : index
    %c0_3 = arith.constant 0 : index
    %3 = vector.load %arg3[%c0_1, %c0_2, %c0_3] : memref<9x1x128xf32, #tpu.memory_space<vmem>>, vector<1x1x128xf32>
    %4 = vector.shape_cast %3 : vector<1x1x128xf32> to vector<1x128xf32>
    %c1 = arith.constant 1 : index
    %c0_4 = arith.constant 0 : index
    %c0_5 = arith.constant 0 : index
    %5 = vector.load %arg3[%c1, %c0_4, %c0_5] : memref<9x1x128xf32, #tpu.memory_space<vmem>>, vector<1x1x128xf32>
    %6 = vector.shape_cast %5 : vector<1x1x128xf32> to vector<1x128xf32>
    %c2 = arith.constant 2 : index
    %c0_6 = arith.constant 0 : index
    %c0_7 = arith.constant 0 : index
    %7 = vector.load %arg3[%c2, %c0_6, %c0_7] : memref<9x1x128xf32, #tpu.memory_space<vmem>>, vector<1x1x128xf32>
    %8 = vector.shape_cast %7 : vector<1x1x128xf32> to vector<1x128xf32>
    %c3 = arith.constant 3 : index
    %c0_8 = arith.constant 0 : index
    %c0_9 = arith.constant 0 : index
    %9 = vector.load %arg3[%c3, %c0_8, %c0_9] : memref<9x1x128xf32, #tpu.memory_space<vmem>>, vector<1x1x128xf32>
    %10 = vector.shape_cast %9 : vector<1x1x128xf32> to vector<1x128xf32>
    %c4 = arith.constant 4 : index
    %c0_10 = arith.constant 0 : index
    %c0_11 = arith.constant 0 : index
    %11 = vector.load %arg3[%c4, %c0_10, %c0_11] : memref<9x1x128xf32, #tpu.memory_space<vmem>>, vector<1x1x128xf32>
    %12 = vector.shape_cast %11 : vector<1x1x128xf32> to vector<1x128xf32>
    %c5 = arith.constant 5 : index
    %c0_12 = arith.constant 0 : index
    %c0_13 = arith.constant 0 : index
    %13 = vector.load %arg3[%c5, %c0_12, %c0_13] : memref<9x1x128xf32, #tpu.memory_space<vmem>>, vector<1x1x128xf32>
    %14 = vector.shape_cast %13 : vector<1x1x128xf32> to vector<1x128xf32>
    %c6 = arith.constant 6 : index
    %c0_14 = arith.constant 0 : index
    %c0_15 = arith.constant 0 : index
    %15 = vector.load %arg3[%c6, %c0_14, %c0_15] : memref<9x1x128xf32, #tpu.memory_space<vmem>>, vector<1x1x128xf32>
    %16 = vector.shape_cast %15 : vector<1x1x128xf32> to vector<1x128xf32>
    %c7 = arith.constant 7 : index
    %c0_16 = arith.constant 0 : index
    %c0_17 = arith.constant 0 : index
    %17 = vector.load %arg3[%c7, %c0_16, %c0_17] : memref<9x1x128xf32, #tpu.memory_space<vmem>>, vector<1x1x128xf32>
    %18 = vector.shape_cast %17 : vector<1x1x128xf32> to vector<1x128xf32>
    %c8 = arith.constant 8 : index
    %c0_18 = arith.constant 0 : index
    %c0_19 = arith.constant 0 : index
    %19 = vector.load %arg3[%c8, %c0_18, %c0_19] : memref<9x1x128xf32, #tpu.memory_space<vmem>>, vector<1x1x128xf32>
    %20 = vector.shape_cast %19 : vector<1x1x128xf32> to vector<1x128xf32>
    %c0_i32 = arith.constant 0 : i32
    %21 = arith.addi %1, %c0_i32 : i32
    %c0_20 = arith.constant 0 : index
    %22 = arith.index_cast %21 : i32 to index
    %c0_21 = arith.constant 0 : index
    %c0_22 = arith.constant 0 : index
    %23 = vector.load %arg2[%c0_20, %22, %c0_21, %c0_22] : memref<1x20x20x128xf32, #tpu.memory_space<vmem>>, vector<1x8x16x128xf32>
    %24 = vector.shape_cast %23 : vector<1x8x16x128xf32> to vector<8x16x128xf32>
    %25 = vector.shape_cast %4 : vector<1x128xf32> to vector<1x1x128xf32>
    %26 = vector.broadcast %25 : vector<1x1x128xf32> to vector<8x16x128xf32>
    %27 = arith.mulf %24, %26 : vector<8x16x128xf32>
    %c0_i32_23 = arith.constant 0 : i32
    %28 = arith.addi %1, %c0_i32_23 : i32
    %c0_24 = arith.constant 0 : index
    %29 = arith.index_cast %28 : i32 to index
    %c2_25 = arith.constant 2 : index
    %c0_26 = arith.constant 0 : index
    %30 = vector.load %arg2[%c0_24, %29, %c2_25, %c0_26] : memref<1x20x20x128xf32, #tpu.memory_space<vmem>>, vector<1x8x16x128xf32>
    %31 = vector.shape_cast %30 : vector<1x8x16x128xf32> to vector<8x16x128xf32>
    %32 = vector.shape_cast %6 : vector<1x128xf32> to vector<1x1x128xf32>
    %33 = vector.broadcast %32 : vector<1x1x128xf32> to vector<8x16x128xf32>
    %34 = arith.mulf %31, %33 : vector<8x16x128xf32>
    %35 = arith.addf %27, %34 : vector<8x16x128xf32>
    %c0_i32_27 = arith.constant 0 : i32
    %36 = arith.addi %1, %c0_i32_27 : i32
    %c0_28 = arith.constant 0 : index
    %37 = arith.index_cast %36 : i32 to index
    %c4_29 = arith.constant 4 : index
    %c0_30 = arith.constant 0 : index
    %38 = vector.load %arg2[%c0_28, %37, %c4_29, %c0_30] : memref<1x20x20x128xf32, #tpu.memory_space<vmem>>, vector<1x8x16x128xf32>
    %39 = vector.shape_cast %38 : vector<1x8x16x128xf32> to vector<8x16x128xf32>
    %40 = vector.shape_cast %8 : vector<1x128xf32> to vector<1x1x128xf32>
    %41 = vector.broadcast %40 : vector<1x1x128xf32> to vector<8x16x128xf32>
    %42 = arith.mulf %39, %41 : vector<8x16x128xf32>
    %43 = arith.addf %35, %42 : vector<8x16x128xf32>
    %c2_i32 = arith.constant 2 : i32
    %44 = arith.addi %1, %c2_i32 : i32
    %c0_31 = arith.constant 0 : index
    %45 = arith.index_cast %44 : i32 to index
    %c0_32 = arith.constant 0 : index
    %c0_33 = arith.constant 0 : index
    %46 = vector.load %arg2[%c0_31, %45, %c0_32, %c0_33] : memref<1x20x20x128xf32, #tpu.memory_space<vmem>>, vector<1x8x16x128xf32>
    %47 = vector.shape_cast %46 : vector<1x8x16x128xf32> to vector<8x16x128xf32>
    %48 = vector.shape_cast %10 : vector<1x128xf32> to vector<1x1x128xf32>
    %49 = vector.broadcast %48 : vector<1x1x128xf32> to vector<8x16x128xf32>
    %50 = arith.mulf %47, %49 : vector<8x16x128xf32>
    %51 = arith.addf %43, %50 : vector<8x16x128xf32>
    %c2_i32_34 = arith.constant 2 : i32
    %52 = arith.addi %1, %c2_i32_34 : i32
    %c0_35 = arith.constant 0 : index
    %53 = arith.index_cast %52 : i32 to index
    %c2_36 = arith.constant 2 : index
    %c0_37 = arith.constant 0 : index
    %54 = vector.load %arg2[%c0_35, %53, %c2_36, %c0_37] : memref<1x20x20x128xf32, #tpu.memory_space<vmem>>, vector<1x8x16x128xf32>
    %55 = vector.shape_cast %54 : vector<1x8x16x128xf32> to vector<8x16x128xf32>
    %56 = vector.shape_cast %12 : vector<1x128xf32> to vector<1x1x128xf32>
    %57 = vector.broadcast %56 : vector<1x1x128xf32> to vector<8x16x128xf32>
    %58 = arith.mulf %55, %57 : vector<8x16x128xf32>
    %59 = arith.addf %51, %58 : vector<8x16x128xf32>
    %c2_i32_38 = arith.constant 2 : i32
    %60 = arith.addi %1, %c2_i32_38 : i32
    %c0_39 = arith.constant 0 : index
    %61 = arith.index_cast %60 : i32 to index
    %c4_40 = arith.constant 4 : index
    %c0_41 = arith.constant 0 : index
    %62 = vector.load %arg2[%c0_39, %61, %c4_40, %c0_41] : memref<1x20x20x128xf32, #tpu.memory_space<vmem>>, vector<1x8x16x128xf32>
    %63 = vector.shape_cast %62 : vector<1x8x16x128xf32> to vector<8x16x128xf32>
    %64 = vector.shape_cast %14 : vector<1x128xf32> to vector<1x1x128xf32>
    %65 = vector.broadcast %64 : vector<1x1x128xf32> to vector<8x16x128xf32>
    %66 = arith.mulf %63, %65 : vector<8x16x128xf32>
    %67 = arith.addf %59, %66 : vector<8x16x128xf32>
    %c4_i32 = arith.constant 4 : i32
    %68 = arith.addi %1, %c4_i32 : i32
    %c0_42 = arith.constant 0 : index
    %69 = arith.index_cast %68 : i32 to index
    %c0_43 = arith.constant 0 : index
    %c0_44 = arith.constant 0 : index
    %70 = vector.load %arg2[%c0_42, %69, %c0_43, %c0_44] : memref<1x20x20x128xf32, #tpu.memory_space<vmem>>, vector<1x8x16x128xf32>
    %71 = vector.shape_cast %70 : vector<1x8x16x128xf32> to vector<8x16x128xf32>
    %72 = vector.shape_cast %16 : vector<1x128xf32> to vector<1x1x128xf32>
    %73 = vector.broadcast %72 : vector<1x1x128xf32> to vector<8x16x128xf32>
    %74 = arith.mulf %71, %73 : vector<8x16x128xf32>
    %75 = arith.addf %67, %74 : vector<8x16x128xf32>
    %c4_i32_45 = arith.constant 4 : i32
    %76 = arith.addi %1, %c4_i32_45 : i32
    %c0_46 = arith.constant 0 : index
    %77 = arith.index_cast %76 : i32 to index
    %c2_47 = arith.constant 2 : index
    %c0_48 = arith.constant 0 : index
    %78 = vector.load %arg2[%c0_46, %77, %c2_47, %c0_48] : memref<1x20x20x128xf32, #tpu.memory_space<vmem>>, vector<1x8x16x128xf32>
    %79 = vector.shape_cast %78 : vector<1x8x16x128xf32> to vector<8x16x128xf32>
    %80 = vector.shape_cast %18 : vector<1x128xf32> to vector<1x1x128xf32>
    %81 = vector.broadcast %80 : vector<1x1x128xf32> to vector<8x16x128xf32>
    %82 = arith.mulf %79, %81 : vector<8x16x128xf32>
    %83 = arith.addf %75, %82 : vector<8x16x128xf32>
    %c4_i32_49 = arith.constant 4 : i32
    %84 = arith.addi %1, %c4_i32_49 : i32
    %c0_50 = arith.constant 0 : index
    %85 = arith.index_cast %84 : i32 to index
    %c4_51 = arith.constant 4 : index
    %c0_52 = arith.constant 0 : index
    %86 = vector.load %arg2[%c0_50, %85, %c4_51, %c0_52] : memref<1x20x20x128xf32, #tpu.memory_space<vmem>>, vector<1x8x16x128xf32>
    %87 = vector.shape_cast %86 : vector<1x8x16x128xf32> to vector<8x16x128xf32>
    %88 = vector.shape_cast %20 : vector<1x128xf32> to vector<1x1x128xf32>
    %89 = vector.broadcast %88 : vector<1x1x128xf32> to vector<8x16x128xf32>
    %90 = arith.mulf %87, %89 : vector<8x16x128xf32>
    %91 = arith.addf %83, %90 : vector<8x16x128xf32>
    %92 = vector.shape_cast %2 : vector<1x128xf32> to vector<1x1x128xf32>
    %93 = vector.broadcast %92 : vector<1x1x128xf32> to vector<8x16x128xf32>
    %94 = arith.addf %91, %93 : vector<8x16x128xf32>
    %95 = arith.truncf %94 : vector<8x16x128xf32> to vector<8x16x128xbf16>
    %c0_53 = arith.constant 0 : index
    %c0_54 = arith.constant 0 : index
    %c0_55 = arith.constant 0 : index
    %96 = vector.load %arg8[%c0_53, %c0_54, %c0_55] : memref<8x16x128xbf16, #tpu.memory_space<vmem>>, vector<8x16x128xbf16>
    tpu.vector_store %arg8[%c0_53, %c0_54, %c0_55], %95 {strides = array<i32>} : memref<8x16x128xbf16, #tpu.memory_space<vmem>>, vector<8x16x128xbf16>,
    %c0_56 = arith.constant 0 : index
    %c0_57 = arith.constant 0 : index
    %c0_58 = arith.constant 0 : index
    %97 = vector.load %arg8[%c0_56, %c0_57, %c0_58] : memref<8x16x128xbf16, #tpu.memory_space<vmem>>, vector<8x16x128xbf16>
    %98 = vector.shape_cast %97 : vector<8x16x128xbf16> to vector<128x128xbf16>
    %c0_59 = arith.constant 0 : index
    %c0_60 = arith.constant 0 : index
    %99 = vector.load %arg5[%c0_59, %c0_60] : memref<128x128xbf16, #tpu.memory_space<vmem>>, vector<128x128xbf16>
    %cst = arith.constant dense<0.000000e+00> : vector<128x128xf32>
    %100 = tpu.matmul %98, %99, %cst {dimension_numbers = #tpu.dot_dimension_numbers<[1], [0], [0], [1], [0, 0, 1, 1], [], []>} : vector<128x128xbf16>, vector<128x128xbf16>, vector<128x128xf32> -> vector<128x128xf32>
    %c0_61 = arith.constant 0 : index
    %c0_62 = arith.constant 0 : index
    %101 = vector.load %arg6[%c0_61, %c0_62] : memref<1x128xf32, #tpu.memory_space<vmem>>, vector<1x128xf32>
    %102 = vector.broadcast %101 : vector<1x128xf32> to vector<128x128xf32>
    %103 = arith.addf %100, %102 : vector<128x128xf32>
    %104 = vector.shape_cast %103 : vector<128x128xf32> to vector<8x16x128xf32>
    %c0_63 = arith.constant 0 : index
    %c0_64 = arith.constant 0 : index
    %c0_65 = arith.constant 0 : index
    %c0_66 = arith.constant 0 : index
    %105 = vector.load %arg7[%c0_63, %c0_64, %c0_65, %c0_66] : memref<1x8x16x128xf32, #tpu.memory_space<vmem>>, vector<1x8x16x128xf32>
    %106 = vector.shape_cast %105 : vector<1x8x16x128xf32> to vector<8x16x128xf32>
    %107 = vector.shape_cast %104 : vector<8x16x128xf32> to vector<1x8x16x128xf32>
    tpu.vector_store %arg7[%c0_63, %c0_64, %c0_65, %c0_66], %107 {strides = array<i32>} : memref<1x8x16x128xf32, #tpu.memory_space<vmem>>, vector<1x8x16x128xf32>,
    return
  }
  func.func @transform_0(%arg0: i32, %arg1: i32) -> (i32, i32, i32, i32) {
    %c0_i32 = arith.constant 0 : i32
    %c0_i32_0 = arith.constant 0 : i32
    %c0_i32_1 = arith.constant 0 : i32
    %c0_i32_2 = arith.constant 0 : i32
    return %arg0, %c0_i32, %c0_i32_0, %c0_i32_1 : i32, i32, i32, i32
  }
  func.func @transform_1(%arg0: i32, %arg1: i32) -> (i32, i32, i32) {
    %c0_i32 = arith.constant 0 : i32
    %c0_i32_0 = arith.constant 0 : i32
    %c0_i32_1 = arith.constant 0 : i32
    %c0_i32_2 = arith.constant 0 : i32
    return %c0_i32, %c0_i32_0, %c0_i32_1 : i32, i32, i32
  }
  func.func @transform_2(%arg0: i32, %arg1: i32) -> (i32, i32) {
    %c0_i32 = arith.constant 0 : i32
    %c0_i32_0 = arith.constant 0 : i32
    %c0_i32_1 = arith.constant 0 : i32
    return %c0_i32, %c0_i32_0 : i32, i32
  }
  func.func @transform_3(%arg0: i32, %arg1: i32) -> (i32, i32) {
    %c0_i32 = arith.constant 0 : i32
    %c0_i32_0 = arith.constant 0 : i32
    %c0_i32_1 = arith.constant 0 : i32
    return %c0_i32, %c0_i32_0 : i32, i32
  }
  func.func @transform_4(%arg0: i32, %arg1: i32) -> (i32, i32) {
    %c0_i32 = arith.constant 0 : i32
    %c0_i32_0 = arith.constant 0 : i32
    %c0_i32_1 = arith.constant 0 : i32
    return %c0_i32, %c0_i32_0 : i32, i32
  }
  func.func @transform_5(%arg0: i32, %arg1: i32) -> (i32, i32, i32, i32) {
    %c0_i32 = arith.constant 0 : i32
    %c0_i32_0 = arith.constant 0 : i32
    %c0_i32_1 = arith.constant 0 : i32
    return %arg0, %arg1, %c0_i32, %c0_i32_0 : i32, i32, i32, i32
  }
}

module attributes {stable_mosaic.version = 11 : i64} {
  func.func @_asc_kernel(%arg0: i32, %arg1: i32, %arg2: memref<1x20x20x128xf32, #tpu.memory_space<vmem>>, %arg3: memref<9x1x128xf32, #tpu.memory_space<vmem>>, %arg4: memref<1x128xf32, #tpu.memory_space<vmem>>, %arg5: memref<128x128xbf16, #tpu.memory_space<vmem>>, %arg6: memref<1x128xf32, #tpu.memory_space<vmem>>, %arg7: memref<1x8x16x128xf32, #tpu.memory_space<vmem>>, %arg8: memref<8x16x128xbf16, #tpu.memory_space<vmem>>) attributes {dimension_semantics = [#tpu.dimension_semantics<parallel>, #tpu.dimension_semantics<arbitrary>], iteration_bounds = array<i64: 2, 2>, scalar_prefetch = 0 : i64, scratch_operands = 1 : i64, tpu.core_type = #tpu.core_type<tc>, window_params = [{transform_indices = @transform_0, window_bounds = array<i64: 1, 20, 20, 128>}, {pipeline_mode = #tpu.pipeline_mode<synchronous>, transform_indices = @transform_1, window_bounds = array<i64: 9, 1, 128>}, {pipeline_mode = #tpu.pipeline_mode<synchronous>, transform_indices = @transform_2, window_bounds = array<i64: 1, 128>}, {pipeline_mode = #tpu.pipeline_mode<synchronous>, transform_indices = @transform_3, window_bounds = array<i64: 128, 128>}, {pipeline_mode = #tpu.pipeline_mode<synchronous>, transform_indices = @transform_4, window_bounds = array<i64: 1, 128>}, {transform_indices = @transform_5, window_bounds = array<i64: 1, 8, 16, 128>}]} {
    %c8_i32 = arith.constant 8 : i32
    %0 = arith.muli %arg1, %c8_i32 : i32
    %1 = tpu.assume_multiple %0, 8 : i32
    %c0 = arith.constant 0 : index
    %c0_0 = arith.constant 0 : index
    %2 = vector.load %arg4[%c0, %c0_0] : memref<1x128xf32, #tpu.memory_space<vmem>>, vector<1x128xf32>
    %c0_1 = arith.constant 0 : index
    %c0_2 = arith.constant 0 : index
    %c0_3 = arith.constant 0 : index
    %3 = vector.load %arg3[%c0_1, %c0_2, %c0_3] : memref<9x1x128xf32, #tpu.memory_space<vmem>>, vector<1x1x128xf32>
    %4 = vector.shape_cast %3 : vector<1x1x128xf32> to vector<1x128xf32>
    %c1 = arith.constant 1 : index
    %c0_4 = arith.constant 0 : index
    %c0_5 = arith.constant 0 : index
    %5 = vector.load %arg3[%c1, %c0_4, %c0_5] : memref<9x1x128xf32, #tpu.memory_space<vmem>>, vector<1x1x128xf32>
    %6 = vector.shape_cast %5 : vector<1x1x128xf32> to vector<1x128xf32>
    %c2 = arith.constant 2 : index
    %c0_6 = arith.constant 0 : index
    %c0_7 = arith.constant 0 : index
    %7 = vector.load %arg3[%c2, %c0_6, %c0_7] : memref<9x1x128xf32, #tpu.memory_space<vmem>>, vector<1x1x128xf32>
    %8 = vector.shape_cast %7 : vector<1x1x128xf32> to vector<1x128xf32>
    %c3 = arith.constant 3 : index
    %c0_8 = arith.constant 0 : index
    %c0_9 = arith.constant 0 : index
    %9 = vector.load %arg3[%c3, %c0_8, %c0_9] : memref<9x1x128xf32, #tpu.memory_space<vmem>>, vector<1x1x128xf32>
    %10 = vector.shape_cast %9 : vector<1x1x128xf32> to vector<1x128xf32>
    %c4 = arith.constant 4 : index
    %c0_10 = arith.constant 0 : index
    %c0_11 = arith.constant 0 : index
    %11 = vector.load %arg3[%c4, %c0_10, %c0_11] : memref<9x1x128xf32, #tpu.memory_space<vmem>>, vector<1x1x128xf32>
    %12 = vector.shape_cast %11 : vector<1x1x128xf32> to vector<1x128xf32>
    %c5 = arith.constant 5 : index
    %c0_12 = arith.constant 0 : index
    %c0_13 = arith.constant 0 : index
    %13 = vector.load %arg3[%c5, %c0_12, %c0_13] : memref<9x1x128xf32, #tpu.memory_space<vmem>>, vector<1x1x128xf32>
    %14 = vector.shape_cast %13 : vector<1x1x128xf32> to vector<1x128xf32>
    %c6 = arith.constant 6 : index
    %c0_14 = arith.constant 0 : index
    %c0_15 = arith.constant 0 : index
    %15 = vector.load %arg3[%c6, %c0_14, %c0_15] : memref<9x1x128xf32, #tpu.memory_space<vmem>>, vector<1x1x128xf32>
    %16 = vector.shape_cast %15 : vector<1x1x128xf32> to vector<1x128xf32>
    %c7 = arith.constant 7 : index
    %c0_16 = arith.constant 0 : index
    %c0_17 = arith.constant 0 : index
    %17 = vector.load %arg3[%c7, %c0_16, %c0_17] : memref<9x1x128xf32, #tpu.memory_space<vmem>>, vector<1x1x128xf32>
    %18 = vector.shape_cast %17 : vector<1x1x128xf32> to vector<1x128xf32>
    %c8 = arith.constant 8 : index
    %c0_18 = arith.constant 0 : index
    %c0_19 = arith.constant 0 : index
    %19 = vector.load %arg3[%c8, %c0_18, %c0_19] : memref<9x1x128xf32, #tpu.memory_space<vmem>>, vector<1x1x128xf32>
    %20 = vector.shape_cast %19 : vector<1x1x128xf32> to vector<1x128xf32>
    %c0_i32 = arith.constant 0 : i32
    %21 = arith.addi %1, %c0_i32 : i32
    %c0_20 = arith.constant 0 : index
    %22 = arith.index_cast %21 : i32 to index
    %c0_21 = arith.constant 0 : index
    %c0_22 = arith.constant 0 : index
    %23 = vector.load %arg2[%c0_20, %22, %c0_21, %c0_22] : memref<1x20x20x128xf32, #tpu.memory_space<vmem>>, vector<1x8x16x128xf32>
    %24 = vector.shape_cast %23 : vector<1x8x16x128xf32> to vector<8x16x128xf32>
    %25 = vector.shape_cast %4 : vector<1x128xf32> to vector<1x1x128xf32>
    %26 = vector.broadcast %25 : vector<1x1x128xf32> to vector<8x16x128xf32>
    %27 = arith.mulf %24, %26 : vector<8x16x128xf32>
    %c0_i32_23 = arith.constant 0 : i32
    %28 = arith.addi %1, %c0_i32_23 : i32
    %c0_24 = arith.constant 0 : index
    %29 = arith.index_cast %28 : i32 to index
    %c2_25 = arith.constant 2 : index
    %c0_26 = arith.constant 0 : index
    %30 = vector.load %arg2[%c0_24, %29, %c2_25, %c0_26] : memref<1x20x20x128xf32, #tpu.memory_space<vmem>>, vector<1x8x16x128xf32>
    %31 = vector.shape_cast %30 : vector<1x8x16x128xf32> to vector<8x16x128xf32>
    %32 = vector.shape_cast %6 : vector<1x128xf32> to vector<1x1x128xf32>
    %33 = vector.broadcast %32 : vector<1x1x128xf32> to vector<8x16x128xf32>
    %34 = arith.mulf %31, %33 : vector<8x16x128xf32>
    %35 = arith.addf %27, %34 : vector<8x16x128xf32>
    %c0_i32_27 = arith.constant 0 : i32
    %36 = arith.addi %1, %c0_i32_27 : i32
    %c0_28 = arith.constant 0 : index
    %37 = arith.index_cast %36 : i32 to index
    %c4_29 = arith.constant 4 : index
    %c0_30 = arith.constant 0 : index
    %38 = vector.load %arg2[%c0_28, %37, %c4_29, %c0_30] : memref<1x20x20x128xf32, #tpu.memory_space<vmem>>, vector<1x8x16x128xf32>
    %39 = vector.shape_cast %38 : vector<1x8x16x128xf32> to vector<8x16x128xf32>
    %40 = vector.shape_cast %8 : vector<1x128xf32> to vector<1x1x128xf32>
    %41 = vector.broadcast %40 : vector<1x1x128xf32> to vector<8x16x128xf32>
    %42 = arith.mulf %39, %41 : vector<8x16x128xf32>
    %43 = arith.addf %35, %42 : vector<8x16x128xf32>
    %c2_i32 = arith.constant 2 : i32
    %44 = arith.addi %1, %c2_i32 : i32
    %c0_31 = arith.constant 0 : index
    %45 = arith.index_cast %44 : i32 to index
    %c0_32 = arith.constant 0 : index
    %c0_33 = arith.constant 0 : index
    %46 = vector.load %arg2[%c0_31, %45, %c0_32, %c0_33] : memref<1x20x20x128xf32, #tpu.memory_space<vmem>>, vector<1x8x16x128xf32>
    %47 = vector.shape_cast %46 : vector<1x8x16x128xf32> to vector<8x16x128xf32>
    %48 = vector.shape_cast %10 : vector<1x128xf32> to vector<1x1x128xf32>
    %49 = vector.broadcast %48 : vector<1x1x128xf32> to vector<8x16x128xf32>
    %50 = arith.mulf %47, %49 : vector<8x16x128xf32>
    %51 = arith.addf %43, %50 : vector<8x16x128xf32>
    %c2_i32_34 = arith.constant 2 : i32
    %52 = arith.addi %1, %c2_i32_34 : i32
    %c0_35 = arith.constant 0 : index
    %53 = arith.index_cast %52 : i32 to index
    %c2_36 = arith.constant 2 : index
    %c0_37 = arith.constant 0 : index
    %54 = vector.load %arg2[%c0_35, %53, %c2_36, %c0_37] : memref<1x20x20x128xf32, #tpu.memory_space<vmem>>, vector<1x8x16x128xf32>
    %55 = vector.shape_cast %54 : vector<1x8x16x128xf32> to vector<8x16x128xf32>
    %56 = vector.shape_cast %12 : vector<1x128xf32> to vector<1x1x128xf32>
    %57 = vector.broadcast %56 : vector<1x1x128xf32> to vector<8x16x128xf32>
    %58 = arith.mulf %55, %57 : vector<8x16x128xf32>
    %59 = arith.addf %51, %58 : vector<8x16x128xf32>
    %c2_i32_38 = arith.constant 2 : i32
    %60 = arith.addi %1, %c2_i32_38 : i32
    %c0_39 = arith.constant 0 : index
    %61 = arith.index_cast %60 : i32 to index
    %c4_40 = arith.constant 4 : index
    %c0_41 = arith.constant 0 : index
    %62 = vector.load %arg2[%c0_39, %61, %c4_40, %c0_41] : memref<1x20x20x128xf32, #tpu.memory_space<vmem>>, vector<1x8x16x128xf32>
    %63 = vector.shape_cast %62 : vector<1x8x16x128xf32> to vector<8x16x128xf32>
    %64 = vector.shape_cast %14 : vector<1x128xf32> to vector<1x1x128xf32>
    %65 = vector.broadcast %64 : vector<1x1x128xf32> to vector<8x16x128xf32>
    %66 = arith.mulf %63, %65 : vector<8x16x128xf32>
    %67 = arith.addf %59, %66 : vector<8x16x128xf32>
    %c4_i32 = arith.constant 4 : i32
    %68 = arith.addi %1, %c4_i32 : i32
    %c0_42 = arith.constant 0 : index
    %69 = arith.index_cast %68 : i32 to index
    %c0_43 = arith.constant 0 : index
    %c0_44 = arith.constant 0 : index
    %70 = vector.load %arg2[%c0_42, %69, %c0_43, %c0_44] : memref<1x20x20x128xf32, #tpu.memory_space<vmem>>, vector<1x8x16x128xf32>
    %71 = vector.shape_cast %70 : vector<1x8x16x128xf32> to vector<8x16x128xf32>
    %72 = vector.shape_cast %16 : vector<1x128xf32> to vector<1x1x128xf32>
    %73 = vector.broadcast %72 : vector<1x1x128xf32> to vector<8x16x128xf32>
    %74 = arith.mulf %71, %73 : vector<8x16x128xf32>
    %75 = arith.addf %67, %74 : vector<8x16x128xf32>
    %c4_i32_45 = arith.constant 4 : i32
    %76 = arith.addi %1, %c4_i32_45 : i32
    %c0_46 = arith.constant 0 : index
    %77 = arith.index_cast %76 : i32 to index
    %c2_47 = arith.constant 2 : index
    %c0_48 = arith.constant 0 : index
    %78 = vector.load %arg2[%c0_46, %77, %c2_47, %c0_48] : memref<1x20x20x128xf32, #tpu.memory_space<vmem>>, vector<1x8x16x128xf32>
    %79 = vector.shape_cast %78 : vector<1x8x16x128xf32> to vector<8x16x128xf32>
    %80 = vector.shape_cast %18 : vector<1x128xf32> to vector<1x1x128xf32>
    %81 = vector.broadcast %80 : vector<1x1x128xf32> to vector<8x16x128xf32>
    %82 = arith.mulf %79, %81 : vector<8x16x128xf32>
    %83 = arith.addf %75, %82 : vector<8x16x128xf32>
    %c4_i32_49 = arith.constant 4 : i32
    %84 = arith.addi %1, %c4_i32_49 : i32
    %c0_50 = arith.constant 0 : index
    %85 = arith.index_cast %84 : i32 to index
    %c4_51 = arith.constant 4 : index
    %c0_52 = arith.constant 0 : index
    %86 = vector.load %arg2[%c0_50, %85, %c4_51, %c0_52] : memref<1x20x20x128xf32, #tpu.memory_space<vmem>>, vector<1x8x16x128xf32>
    %87 = vector.shape_cast %86 : vector<1x8x16x128xf32> to vector<8x16x128xf32>
    %88 = vector.shape_cast %20 : vector<1x128xf32> to vector<1x1x128xf32>
    %89 = vector.broadcast %88 : vector<1x1x128xf32> to vector<8x16x128xf32>
    %90 = arith.mulf %87, %89 : vector<8x16x128xf32>
    %91 = arith.addf %83, %90 : vector<8x16x128xf32>
    %92 = vector.shape_cast %2 : vector<1x128xf32> to vector<1x1x128xf32>
    %93 = vector.broadcast %92 : vector<1x1x128xf32> to vector<8x16x128xf32>
    %94 = arith.addf %91, %93 : vector<8x16x128xf32>
    %95 = arith.truncf %94 : vector<8x16x128xf32> to vector<8x16x128xbf16>
    %c0_53 = arith.constant 0 : index
    %c0_54 = arith.constant 0 : index
    %c0_55 = arith.constant 0 : index
    %96 = vector.load %arg8[%c0_53, %c0_54, %c0_55] : memref<8x16x128xbf16, #tpu.memory_space<vmem>>, vector<8x16x128xbf16>
    tpu.vector_store %arg8[%c0_53, %c0_54, %c0_55], %95 {strides = array<i32>} : memref<8x16x128xbf16, #tpu.memory_space<vmem>>, vector<8x16x128xbf16>,
    %c0_56 = arith.constant 0 : index
    %c0_57 = arith.constant 0 : index
    %c0_58 = arith.constant 0 : index
    %97 = vector.load %arg8[%c0_56, %c0_57, %c0_58] : memref<8x16x128xbf16, #tpu.memory_space<vmem>>, vector<8x16x128xbf16>
    %98 = vector.shape_cast %97 : vector<8x16x128xbf16> to vector<128x128xbf16>
    %c0_59 = arith.constant 0 : index
    %c0_60 = arith.constant 0 : index
    %99 = vector.load %arg5[%c0_59, %c0_60] : memref<128x128xbf16, #tpu.memory_space<vmem>>, vector<128x128xbf16>
    %cst = arith.constant dense<0.000000e+00> : vector<128x128xf32>
    %100 = tpu.matmul %98, %99, %cst {dimension_numbers = #tpu.dot_dimension_numbers<[1], [0], [0], [1], [0, 0, 1, 1], [], []>} : vector<128x128xbf16>, vector<128x128xbf16>, vector<128x128xf32> -> vector<128x128xf32>
    %c0_61 = arith.constant 0 : index
    %c0_62 = arith.constant 0 : index
    %101 = vector.load %arg6[%c0_61, %c0_62] : memref<1x128xf32, #tpu.memory_space<vmem>>, vector<1x128xf32>
    %102 = vector.broadcast %101 : vector<1x128xf32> to vector<128x128xf32>
    %103 = arith.addf %100, %102 : vector<128x128xf32>
    %104 = vector.shape_cast %103 : vector<128x128xf32> to vector<8x16x128xf32>
    %c0_63 = arith.constant 0 : index
    %c0_64 = arith.constant 0 : index
    %c0_65 = arith.constant 0 : index
    %c0_66 = arith.constant 0 : index
    %105 = vector.load %arg7[%c0_63, %c0_64, %c0_65, %c0_66] : memref<1x8x16x128xf32, #tpu.memory_space<vmem>>, vector<1x8x16x128xf32>
    %106 = vector.shape_cast %105 : vector<1x8x16x128xf32> to vector<8x16x128xf32>
    %107 = vector.shape_cast %104 : vector<8x16x128xf32> to vector<1x8x16x128xf32>
    tpu.vector_store %arg7[%c0_63, %c0_64, %c0_65, %c0_66], %107 {strides = array<i32>} : memref<1x8x16x128xf32, #tpu.memory_space<vmem>>, vector<1x8x16x128xf32>,
    return
  }
  func.func @transform_0(%arg0: i32, %arg1: i32) -> (i32, i32, i32, i32) {
    %c0_i32 = arith.constant 0 : i32
    %c0_i32_0 = arith.constant 0 : i32
    %c0_i32_1 = arith.constant 0 : i32
    %c0_i32_2 = arith.constant 0 : i32
    return %arg0, %c0_i32, %c0_i32_0, %c0_i32_1 : i32, i32, i32, i32
  }
  func.func @transform_1(%arg0: i32, %arg1: i32) -> (i32, i32, i32) {
    %c0_i32 = arith.constant 0 : i32
    %c0_i32_0 = arith.constant 0 : i32
    %c0_i32_1 = arith.constant 0 : i32
    %c0_i32_2 = arith.constant 0 : i32
    return %c0_i32, %c0_i32_0, %c0_i32_1 : i32, i32, i32
  }
  func.func @transform_2(%arg0: i32, %arg1: i32) -> (i32, i32) {
    %c0_i32 = arith.constant 0 : i32
    %c0_i32_0 = arith.constant 0 : i32
    %c0_i32_1 = arith.constant 0 : i32
    return %c0_i32, %c0_i32_0 : i32, i32
  }
  func.func @transform_3(%arg0: i32, %arg1: i32) -> (i32, i32) {
    %c0_i32 = arith.constant 0 : i32
    %c0_i32_0 = arith.constant 0 : i32
    %c0_i32_1 = arith.constant 0 : i32
    return %c0_i32, %c0_i32_0 : i32, i32
  }
  func.func @transform_4(%arg0: i32, %arg1: i32) -> (i32, i32) {
    %c0_i32 = arith.constant 0 : i32
    %c0_i32_0 = arith.constant 0 : i32
    %c0_i32_1 = arith.constant 0 : i32
    return %c0_i32, %c0_i32_0 : i32, i32
  }
  func.func @transform_5(%arg0: i32, %arg1: i32) -> (i32, i32, i32, i32) {
    %c0_i32 = arith.constant 0 : i32
    %c0_i32_0 = arith.constant 0 : i32
    %c0_i32_1 = arith.constant 0 : i32
    return %arg0, %arg1, %c0_i32, %c0_i32_0 : i32, i32, i32, i32
  }
}

</mosaic_0001>

<llo_original>
// kernel: tpu_custom_call.1
$region0: #{tpu_custom_call.1}
  #allocation0 [shape = 'u32[]', space=smem, size = 0x4, offset = 0x4, fixed_abs, tag = 'smem constant byte address 0x4 - core index']
  #allocation1 [shape = 'u32[144,128]{1,0:T(1,128)}', space=vmem, size = 0x12000, scoped, tag = 'internal scratch']
  #allocation2 [shape = 'bf16[8,16,128]{2,1,0:T(16,128)(2,1)}', space=vmem, size = 0x8000, scoped, tag = 'scratch operand']
  %s0 = inlined_call_operand.vmem [shape: f32[2,20,20,128], index: 0, kind: input, shape index: {}]
  %s1 = inlined_call_operand.vmem [shape: f32[9,1,128], index: 1, kind: input, shape index: {}]
  %s2 = inlined_call_operand.vmem [shape: f32[1,128], index: 2, kind: input, shape index: {}]
  %s3 = inlined_call_operand.vmem [shape: bf16[128,128], index: 3, kind: input, shape index: {}]
  %s4 = inlined_call_operand.vmem [shape: f32[1,128], index: 4, kind: input, shape index: {}]
  %s5 = inlined_call_operand.hbm [shape: f32[2,16,16,128], index: 5, kind: output, shape index: {}]
  %s6 = sld [smem:[#allocation0]]
  $region53: #{tpu_custom_call.1} parent=0
    _
  %s8 = ssub.s32 1, %s6
  %s9 = scalar_select 0, %s8, %s6
  $region1: #{tpu_custom_call.1} parent=0
    #allocation3 [shape = 'u8[131072]{0}', space=vmem, size = 0x20000, scoped, tag = 'output window, operand 0']
    #allocation4 [shape = 's32[2]{0}', space=sflag, size = 0x8, scoped, tag = 'scoped memory for tpu_custom_call.1']
    %10 = vsyncpa [#allocation4], 0
    %s11 = scalar_lea.sflag [#allocation4], 1
    %12 = vsyncpa %s11, 0
    loop: start=0, step=1, limit=6
    $region2: #{tpu_custom_call.1} parent=1 // loop_pre_header
      _
    $region3: #{tpu_custom_call.1} parent=1 // loop_header
      %s14 = sphi 0, %s18
      %p15 = scmp.ge.s32.totalorder %s14, 6
      %s21 = sphi 0, %s33
      %s22 = sphi 0, %s29
      %s23 = sphi 0, %s21
      %s24 = sphi 0, %s22
      %s25 = sphi 0, %s23
      %s26 = sphi 0, %s24
      %s36 = sphi 0, %s38
      %s39 = sphi 0, %s36
      %s40 = sphi 0, %s39
      %s56 = sphi 0, %s40
      %s60 = sphi 0, %s60
      %s62 = sphi 0, %s60
      %s63 = sphi 0, %s62
      %s77 = sphi 0, %s63
      %s81 = sphi 0, %s81
      %s83 = sphi 0, %s81
      %s84 = sphi 0, %s83
      %s98 = sphi 0, %s84
      %s102 = sphi 0, %s102
      %s104 = sphi 0, %s102
      %s105 = sphi 0, %s104
      %s119 = sphi 0, %s105
      %s123 = sphi 0, %s123
      %s125 = sphi 0, %s123
      %s126 = sphi 0, %s125
      %s140 = sphi 0, %s126
      %s148 = sphi 0, %s150
      %s151 = sphi 0, %s148
      %s152 = sphi 0, %s151
      %s168 = sphi 0, %s152
    $region4: #{tpu_custom_call.1} parent=1 // loop_header_branch
      %17 = sbr.rel (%p15) target = $region8
    $region5: #{tpu_custom_call.1} parent=1 // loop_body
      %s19 = ssub.s32 %s14, 1
      %s20 = ssub.s32 %s14, 2
      %s27 = sadd.s32 1, %s22
      %p28 = scmp.ge.s32.totalorder %s27, 2
      %s29 = scalar_select %p28, 0, %s27
      %s30 = sadd.s32 1, %s21
      %s31 = scalar_select %p28, %s30, %s21
      %p32 = scmp.ge.s32.totalorder %s31, 2
      %s33 = scalar_select %p32, 0, %s31
      %s34 = ssub.s32 %s21, %s33
      %p35 = scmp.eq.s32.totalorder %s34, 0
      %s37 = sadd.s32 %s36, 1
      %s38 = scalar_select %p35, %s36, %s37
      %p41 = pneg %p35
      %p42 = scmp.eq.s32.totalorder %s14, 3
      %p43 = por %p41, %p42
      %p44 = scmp.ne.s32.totalorder %s36, %s39
      %p45 = scmp.eq.s32.totalorder %s14, 0
      %p46 = por %p44, %p45
      %p47 = scmp.ne.s32.totalorder %s36, %s39
      %p48 = scmp.eq.s32.totalorder %s19, 3
      %p49 = por %p47, %p48
      %p50 = scmp.ne.s32.totalorder %s39, %s40
      %p51 = scmp.eq.s32.totalorder %s19, 0
      %p52 = por %p50, %p51
      %p53 = scmp.ne.s32.totalorder %s39, %s40
      %p54 = scmp.eq.s32.totalorder %s20, 3
      %p55 = por %p53, %p54
      %p57 = scmp.ne.s32.totalorder %s40, %s56
      %p58 = scmp.eq.s32.totalorder %s20, 0
      %p59 = por %p57, %p58
      %s61 = sadd.s32 %s60, 1
      %p64 = scmp.eq.s32.totalorder %s14, 3
      %p65 = scmp.ne.s32.totalorder %s60, %s62
      %p66 = scmp.eq.s32.totalorder %s14, 0
      %p67 = por %p65, %p66
      %p68 = scmp.ne.s32.totalorder %s60, %s62
      %p69 = scmp.eq.s32.totalorder %s19, 3
      %p70 = por %p68, %p69
      %p71 = scmp.ne.s32.totalorder %s62, %s63
      %p72 = scmp.eq.s32.totalorder %s19, 0
      %p73 = por %p71, %p72
      %p74 = scmp.ne.s32.totalorder %s62, %s63
      %p75 = scmp.eq.s32.totalorder %s20, 3
      %p76 = por %p74, %p75
      %p78 = scmp.ne.s32.totalorder %s63, %s77
      %p79 = scmp.eq.s32.totalorder %s20, 0
      %p80 = por %p78, %p79
      %s82 = sadd.s32 %s81, 1
      %p85 = scmp.eq.s32.totalorder %s14, 3
      %p86 = scmp.ne.s32.totalorder %s81, %s83
      %p87 = scmp.eq.s32.totalorder %s14, 0
      %p88 = por %p86, %p87
      %p89 = scmp.ne.s32.totalorder %s81, %s83
      %p90 = scmp.eq.s32.totalorder %s19, 3
      %p91 = por %p89, %p90
      %p92 = scmp.ne.s32.totalorder %s83, %s84
      %p93 = scmp.eq.s32.totalorder %s19, 0
      %p94 = por %p92, %p93
      %p95 = scmp.ne.s32.totalorder %s83, %s84
      %p96 = scmp.eq.s32.totalorder %s20, 3
      %p97 = por %p95, %p96
      %p99 = scmp.ne.s32.totalorder %s84, %s98
      %p100 = scmp.eq.s32.totalorder %s20, 0
      %p101 = por %p99, %p100
      %s103 = sadd.s32 %s102, 1
      %p106 = scmp.eq.s32.totalorder %s14, 3
      %p107 = scmp.ne.s32.totalorder %s102, %s104
      %p108 = scmp.eq.s32.totalorder %s14, 0
      %p109 = por %p107, %p108
      %p110 = scmp.ne.s32.totalorder %s102, %s104
      %p111 = scmp.eq.s32.totalorder %s19, 3
      %p112 = por %p110, %p111
      %p113 = scmp.ne.s32.totalorder %s104, %s105
      %p114 = scmp.eq.s32.totalorder %s19, 0
      %p115 = por %p113, %p114
      %p116 = scmp.ne.s32.totalorder %s104, %s105
      %p117 = scmp.eq.s32.totalorder %s20, 3
      %p118 = por %p116, %p117
      %p120 = scmp.ne.s32.totalorder %s105, %s119
      %p121 = scmp.eq.s32.totalorder %s20, 0
      %p122 = por %p120, %p121
      %s124 = sadd.s32 %s123, 1
      %p127 = scmp.eq.s32.totalorder %s14, 3
      %p128 = scmp.ne.s32.totalorder %s123, %s125
      %p129 = scmp.eq.s32.totalorder %s14, 0
      %p130 = por %p128, %p129
      %p131 = scmp.ne.s32.totalorder %s123, %s125
      %p132 = scmp.eq.s32.totalorder %s19, 3
      %p133 = por %p131, %p132
      %p134 = scmp.ne.s32.totalorder %s125, %s126
      %p135 = scmp.eq.s32.totalorder %s19, 0
      %p136 = por %p134, %p135
      %p137 = scmp.ne.s32.totalorder %s125, %s126
      %p138 = scmp.eq.s32.totalorder %s20, 3
      %p139 = por %p137, %p138
      %p141 = scmp.ne.s32.totalorder %s126, %s140
      %p142 = scmp.eq.s32.totalorder %s20, 0
      %p143 = por %p141, %p142
      %s144 = ssub.s32 %s21, %s33
      %s145 = ssub.s32 %s22, %s29
      %s146 = sor.u32 %s144, %s145
      %p147 = scmp.eq.s32.totalorder %s146, 0
      %s149 = sadd.s32 %s148, 1
      %s150 = scalar_select %p147, %s148, %s149
      %p153 = pneg %p147
      %p154 = scmp.eq.s32.totalorder %s14, 3
      %p155 = por %p153, %p154
      %p156 = scmp.ne.s32.totalorder %s148, %s151
      %p157 = scmp.eq.s32.totalorder %s14, 0
      %p158 = por %p156, %p157
      %p159 = scmp.ne.s32.totalorder %s148, %s151
      %p160 = scmp.eq.s32.totalorder %s19, 3
      %p161 = por %p159, %p160
      %p162 = scmp.ne.s32.totalorder %s151, %s152
      %p163 = scmp.eq.s32.totalorder %s19, 0
      %p164 = por %p162, %p163
      %p165 = scmp.ne.s32.totalorder %s151, %s152
      %p166 = scmp.eq.s32.totalorder %s20, 3
      %p167 = por %p165, %p166
      %p169 = scmp.ne.s32.totalorder %s152, %s168
      %p170 = scmp.eq.s32.totalorder %s20, 0
      %p171 = por %p169, %p170
      %p172 = scmp.le.s32.totalorder 1, %s14
      %p173 = scmp.lt.s32.totalorder %s14, 5
      %p174 = pnand %p172, %p173
      %p175 = pneg %p174
      // Predicated region
      $region9: #{tpu_custom_call.1} parent=5 // pred_check
        _
      $region10: #{tpu_custom_call.1} parent=5 // pred_check_branch
        %177 = sbr.rel (%p174) target = $region12
      $region11: #{tpu_custom_call.1} parent=5 // pred_region
        %s178 = ssub.s32 %s14, 1
        // Predicated region
        $region13: #{tpu_custom_call.1} parent=11 // pred_check
          %p179 = pneg %p52
        $region14: #{tpu_custom_call.1} parent=11 // pred_check_branch
          %181 = sbr.rel (%p179) target = $region16
        $region15: #{tpu_custom_call.1} parent=11 // pred_region
          %p182 = scmp.lt.s32.totalorder %s23, 1
          %s183 = scalar_select %p182, %s23, 1
          %s184 = smul.addr %s183, 60
          %s185 = smul.addr %s184, 8
          %s186 = scalar_lea.vmem %s0, %s185
        $region16: #{tpu_custom_call.1} parent=11 // pred_fallthru
          _
        // Predicated region
        $region17: #{tpu_custom_call.1} parent=11 // pred_check
          %p187 = pneg %p73
        $region18: #{tpu_custom_call.1} parent=11 // pred_check_branch
          %189 = sbr.rel (%p187) target = $region20
        $region19: #{tpu_custom_call.1} parent=11 // pred_region
          _
        $region20: #{tpu_custom_call.1} parent=11 // pred_fallthru
          _
        // Predicated region
        $region21: #{tpu_custom_call.1} parent=11 // pred_check
          %p190 = pneg %p94
        $region22: #{tpu_custom_call.1} parent=11 // pred_check_branch
          %192 = sbr.rel (%p190) target = $region24
        $region23: #{tpu_custom_call.1} parent=11 // pred_region
          _
        $region24: #{tpu_custom_call.1} parent=11 // pred_fallthru
          _
        // Predicated region
        $region25: #{tpu_custom_call.1} parent=11 // pred_check
          %p193 = pneg %p115
        $region26: #{tpu_custom_call.1} parent=11 // pred_check_branch
          %195 = sbr.rel (%p193) target = $region28
        $region27: #{tpu_custom_call.1} parent=11 // pred_region
          _
        $region28: #{tpu_custom_call.1} parent=11 // pred_fallthru
          _
        // Predicated region
        $region29: #{tpu_custom_call.1} parent=11 // pred_check
          %p196 = pneg %p136
        $region30: #{tpu_custom_call.1} parent=11 // pred_check_branch
          %198 = sbr.rel (%p196) target = $region32
        $region31: #{tpu_custom_call.1} parent=11 // pred_region
          _
        $region32: #{tpu_custom_call.1} parent=11 // pred_fallthru
          _
      $region12: #{tpu_custom_call.1} parent=5 // pred_fallthru
        _
      %p199 = scmp.lt.s32.totalorder %s14, 4
      // Predicated region
      $region33: #{tpu_custom_call.1} parent=5 // pred_check
        %p200 = pneg %p199
      $region34: #{tpu_custom_call.1} parent=5 // pred_check_branch
        %202 = sbr.rel (%p200) target = $region36
      $region35: #{tpu_custom_call.1} parent=5 // pred_region
        _
      $region36: #{tpu_custom_call.1} parent=5 // pred_fallthru
        _
      %p203 = scmp.le.s32.totalorder 1, %s14
      %p204 = scmp.lt.s32.totalorder %s14, 5
      %p205 = pnand %p203, %p204
      %p206 = pneg %p205
      // Predicated region
      $region37: #{tpu_custom_call.1} parent=5 // pred_check
        _
      $region38: #{tpu_custom_call.1} parent=5 // pred_check_branch
        %208 = sbr.rel (%p205) target = $region40
      $region39: #{tpu_custom_call.1} parent=5 // pred_region
        %s209 = ssub.s32 %s14, 1
        %p210 = scmp.lt.s32.totalorder %s23, 1
        %s211 = scalar_select %p210, %s23, 1
        %s212 = smul.addr %s211, 60
        %s213 = smul.addr %s212, 8
        %s214 = scalar_lea.vmem %s0, %s213
        %p215 = pneg %p52
        %p216 = pneg %p49
        %p217 = pneg %p73
        %p218 = pneg %p70
        %p219 = pneg %p94
        %p220 = pneg %p91
        %p221 = pneg %p115
        %p222 = pneg %p112
        %p223 = pneg %p136
        %p224 = pneg %p133
        %p225 = pneg %p164
        %p226 = pneg %p161
        %s227 = sand.u32 %s151, 1
        %s228 = scalar_lea.sflag [#allocation4], %s227
        %s229 = sand.u32 %s151, 1
        %s230 = smul.addr %s229, 128
        %s231 = scalar_lea.vmem [#allocation3], %s230
        %p232 = scmp.lt.s32.totalorder %s23, 1
        %s233 = scalar_select %p232, %s23, 1
        %s234 = smul.addr %s233, 60
        %s235 = smul.addr %s234, 8
        %s236 = scalar_lea.vmem %s0, %s235
        %s237 = smul.u32 8, %s24
        %s239 = smul.u32 %s24, 8
        %v240 = vld [vmem:[%s2] sm:$0x1]
        %v241 = vld [vmem:[%s1] sm:$0x1]
        %s242 = scalar_lea.vmem %s1, 1
        %v243 = vld [vmem:[%s242] sm:$0x1]
        %s244 = scalar_lea.vmem %s1, 2
        %v245 = vld [vmem:[%s244] sm:$0x1]
        %s246 = scalar_lea.vmem %s1, 3
        %v247 = vld [vmem:[%s246] sm:$0x1]
        %s248 = scalar_lea.vmem %s1, 4
        %v249 = vld [vmem:[%s248] sm:$0x1]
        %s250 = scalar_lea.vmem %s1, 5
        %v251 = vld [vmem:[%s250] sm:$0x1]
        %s252 = scalar_lea.vmem %s1, 6
        %v253 = vld [vmem:[%s252] sm:$0x1]
        %s254 = scalar_lea.vmem %s1, 7
        %v255 = vld [vmem:[%s254] sm:$0x1]
        %s256 = scalar_lea.vmem %s1, 8
        %v257 = vld [vmem:[%s256] sm:$0x1]
        %s258 = smul.u32 %s239, 24
        %s259 = scalar_lea.vmem %s236, %s258
        %v260 = vld [vmem:[%s259] sm:$0xff]
        %v261 = vld [vmem:[%s259 + $0x8] sm:$0xff]
        %v262 = vld [vmem:[%s259 + $0x18] sm:$0xff]
        %v263 = vld [vmem:[%s259 + $0x20] sm:$0xff]
        %v264 = vld [vmem:[%s259 + $0x30] sm:$0xff]
        %v265 = vld [vmem:[%s259 + $0x38] sm:$0xff]
        %v266 = vld [vmem:[%s259 + $0x48] sm:$0xff]
        %v267 = vld [vmem:[%s259 + $0x50] sm:$0xff]
        %v268 = vld [vmem:[%s259 + $0x60] sm:$0xff]
        %v269 = vld [vmem:[%s259 + $0x68] sm:$0xff]
        %v270 = vld [vmem:[%s259 + $0x78] sm:$0xff]
        %v271 = vld [vmem:[%s259 + $0x80] sm:$0xff]
        %v272 = vld [vmem:[%s259 + $0x90] sm:$0xff]
        %v273 = vld [vmem:[%s259 + $0x98] sm:$0xff]
        %v274 = vld [vmem:[%s259 + $0xa8] sm:$0xff]
        %v275 = vld [vmem:[%s259 + $0xb0] sm:$0xff]
        %v277 = vlaneseq
        %v278 = vshrl.u32 %v277, 7
        %v279 = vsub.s32 0, %v278
        %v280 = vrot.slane %v241, %v279
        %v282 = vmul.f32 %v260, %v280
        %v283 = vmul.f32 %v261, %v280
        %v284 = vmul.f32 %v262, %v280
        %v285 = vmul.f32 %v263, %v280
        %v286 = vmul.f32 %v264, %v280
        %v287 = vmul.f32 %v265, %v280
        %v288 = vmul.f32 %v266, %v280
        %v289 = vmul.f32 %v267, %v280
        %v290 = vmul.f32 %v268, %v280
        %v291 = vmul.f32 %v269, %v280
        %v292 = vmul.f32 %v270, %v280
        %v293 = vmul.f32 %v271, %v280
        %v294 = vmul.f32 %v272, %v280
        %v295 = vmul.f32 %v273, %v280
        %v296 = vmul.f32 %v274, %v280
        %v297 = vmul.f32 %v275, %v280
        %v298 = vld [vmem:[%s259 + $0x2] sm:$0xff]
        %v299 = vld [vmem:[%s259 + $0xa] sm:$0xff]
        %v300 = vld [vmem:[%s259 + $0x1a] sm:$0xff]
        %v301 = vld [vmem:[%s259 + $0x22] sm:$0xff]
        %v302 = vld [vmem:[%s259 + $0x32] sm:$0xff]
        %v303 = vld [vmem:[%s259 + $0x3a] sm:$0xff]
        %v304 = vld [vmem:[%s259 + $0x4a] sm:$0xff]
        %v305 = vld [vmem:[%s259 + $0x52] sm:$0xff]
        %v306 = vld [vmem:[%s259 + $0x62] sm:$0xff]
        %v307 = vld [vmem:[%s259 + $0x6a] sm:$0xff]
        %v308 = vld [vmem:[%s259 + $0x7a] sm:$0xff]
        %v309 = vld [vmem:[%s259 + $0x82] sm:$0xff]
        %v310 = vld [vmem:[%s259 + $0x92] sm:$0xff]
        %v311 = vld [vmem:[%s259 + $0x9a] sm:$0xff]
        %v312 = vld [vmem:[%s259 + $0xaa] sm:$0xff]
        %v313 = vld [vmem:[%s259 + $0xb2] sm:$0xff]
        %v315 = vlaneseq
        %v316 = vshrl.u32 %v315, 7
        %v317 = vsub.s32 0, %v316
        %v318 = vrot.slane %v243, %v317
        %v320 = vmul.f32 %v298, %v318
        %v321 = vmul.f32 %v299, %v318
        %v322 = vmul.f32 %v300, %v318
        %v323 = vmul.f32 %v301, %v318
        %v324 = vmul.f32 %v302, %v318
        %v325 = vmul.f32 %v303, %v318
        %v326 = vmul.f32 %v304, %v318
        %v327 = vmul.f32 %v305, %v318
        %v328 = vmul.f32 %v306, %v318
        %v329 = vmul.f32 %v307, %v318
        %v330 = vmul.f32 %v308, %v318
        %v331 = vmul.f32 %v309, %v318
        %v332 = vmul.f32 %v310, %v318
        %v333 = vmul.f32 %v311, %v318
        %v334 = vmul.f32 %v312, %v318
        %v335 = vmul.f32 %v313, %v318
        %v336 = vadd.f32 %v282, %v320
        %v337 = vadd.f32 %v283, %v321
        %v338 = vadd.f32 %v284, %v322
        %v339 = vadd.f32 %v285, %v323
        %v340 = vadd.f32 %v286, %v324
        %v341 = vadd.f32 %v287, %v325
        %v342 = vadd.f32 %v288, %v326
        %v343 = vadd.f32 %v289, %v327
        %v344 = vadd.f32 %v290, %v328
        %v345 = vadd.f32 %v291, %v329
        %v346 = vadd.f32 %v292, %v330
        %v347 = vadd.f32 %v293, %v331
        %v348 = vadd.f32 %v294, %v332
        %v349 = vadd.f32 %v295, %v333
        %v350 = vadd.f32 %v296, %v334
        %v351 = vadd.f32 %v297, %v335
        %v352 = vld [vmem:[%s259 + $0x4] sm:$0xff]
        %v353 = vld [vmem:[%s259 + $0xc] sm:$0xff]
        %v354 = vld [vmem:[%s259 + $0x1c] sm:$0xff]
        %v355 = vld [vmem:[%s259 + $0x24] sm:$0xff]
        %v356 = vld [vmem:[%s259 + $0x34] sm:$0xff]
        %v357 = vld [vmem:[%s259 + $0x3c] sm:$0xff]
        %v358 = vld [vmem:[%s259 + $0x4c] sm:$0xff]
        %v359 = vld [vmem:[%s259 + $0x54] sm:$0xff]
        %v360 = vld [vmem:[%s259 + $0x64] sm:$0xff]
        %v361 = vld [vmem:[%s259 + $0x6c] sm:$0xff]
        %v362 = vld [vmem:[%s259 + $0x7c] sm:$0xff]
        %v363 = vld [vmem:[%s259 + $0x84] sm:$0xff]
        %v364 = vld [vmem:[%s259 + $0x94] sm:$0xff]
        %v365 = vld [vmem:[%s259 + $0x9c] sm:$0xff]
        %v366 = vld [vmem:[%s259 + $0xac] sm:$0xff]
        %v367 = vld [vmem:[%s259 + $0xb4] sm:$0xff]
        %v369 = vlaneseq
        %v370 = vshrl.u32 %v369, 7
        %v371 = vsub.s32 0, %v370
        %v372 = vrot.slane %v245, %v371
        %v374 = vmul.f32 %v352, %v372
        %v375 = vmul.f32 %v353, %v372
        %v376 = vmul.f32 %v354, %v372
        %v377 = vmul.f32 %v355, %v372
        %v378 = vmul.f32 %v356, %v372
        %v379 = vmul.f32 %v357, %v372
        %v380 = vmul.f32 %v358, %v372
        %v381 = vmul.f32 %v359, %v372
        %v382 = vmul.f32 %v360, %v372
        %v383 = vmul.f32 %v361, %v372
        %v384 = vmul.f32 %v362, %v372
        %v385 = vmul.f32 %v363, %v372
        %v386 = vmul.f32 %v364, %v372
        %v387 = vmul.f32 %v365, %v372
        %v388 = vmul.f32 %v366, %v372
        %v389 = vmul.f32 %v367, %v372
        %v390 = vadd.f32 %v336, %v374
        %v391 = vadd.f32 %v337, %v375
        %v392 = vadd.f32 %v338, %v376
        %v393 = vadd.f32 %v339, %v377
        %v394 = vadd.f32 %v340, %v378
        %v395 = vadd.f32 %v341, %v379
        %v396 = vadd.f32 %v342, %v380
        %v397 = vadd.f32 %v343, %v381
        %v398 = vadd.f32 %v344, %v382
        %v399 = vadd.f32 %v345, %v383
        %v400 = vadd.f32 %v346, %v384
        %v401 = vadd.f32 %v347, %v385
        %v402 = vadd.f32 %v348, %v386
        %v403 = vadd.f32 %v349, %v387
        %v404 = vadd.f32 %v350, %v388
        %v405 = vadd.f32 %v351, %v389
        %s406 = sadd.s32 %s239, 2
        %s407 = smul.u32 %s406, 24
        %s408 = scalar_lea.vmem %s236, %s407
        %v409 = vld [vmem:[%s408] sm:$0xff]
        %v410 = vld [vmem:[%s408 + $0x8] sm:$0xff]
        %v411 = vld [vmem:[%s408 + $0x18] sm:$0xff]
        %v412 = vld [vmem:[%s408 + $0x20] sm:$0xff]
        %v413 = vld [vmem:[%s408 + $0x30] sm:$0xff]
        %v414 = vld [vmem:[%s408 + $0x38] sm:$0xff]
        %v415 = vld [vmem:[%s408 + $0x48] sm:$0xff]
        %v416 = vld [vmem:[%s408 + $0x50] sm:$0xff]
        %v417 = vld [vmem:[%s408 + $0x60] sm:$0xff]
        %v418 = vld [vmem:[%s408 + $0x68] sm:$0xff]
        %v419 = vld [vmem:[%s408 + $0x78] sm:$0xff]
        %v420 = vld [vmem:[%s408 + $0x80] sm:$0xff]
        %v421 = vld [vmem:[%s408 + $0x90] sm:$0xff]
        %v422 = vld [vmem:[%s408 + $0x98] sm:$0xff]
        %v423 = vld [vmem:[%s408 + $0xa8] sm:$0xff]
        %v424 = vld [vmem:[%s408 + $0xb0] sm:$0xff]
        %v426 = vlaneseq
        %v427 = vshrl.u32 %v426, 7
        %v428 = vsub.s32 0, %v427
        %v429 = vrot.slane %v247, %v428
        %v431 = vmul.f32 %v409, %v429
        %v432 = vmul.f32 %v410, %v429
        %v433 = vmul.f32 %v411, %v429
        %v434 = vmul.f32 %v412, %v429
        %v435 = vmul.f32 %v413, %v429
        %v436 = vmul.f32 %v414, %v429
        %v437 = vmul.f32 %v415, %v429
        %v438 = vmul.f32 %v416, %v429
        %v439 = vmul.f32 %v417, %v429
        %v440 = vmul.f32 %v418, %v429
        %v441 = vmul.f32 %v419, %v429
        %v442 = vmul.f32 %v420, %v429
        %v443 = vmul.f32 %v421, %v429
        %v444 = vmul.f32 %v422, %v429
        %v445 = vmul.f32 %v423, %v429
        %v446 = vmul.f32 %v424, %v429
        %v447 = vadd.f32 %v390, %v431
        %v448 = vadd.f32 %v391, %v432
        %v449 = vadd.f32 %v392, %v433
        %v450 = vadd.f32 %v393, %v434
        %v451 = vadd.f32 %v394, %v435
        %v452 = vadd.f32 %v395, %v436
        %v453 = vadd.f32 %v396, %v437
        %v454 = vadd.f32 %v397, %v438
        %v455 = vadd.f32 %v398, %v439
        %v456 = vadd.f32 %v399, %v440
        %v457 = vadd.f32 %v400, %v441
        %v458 = vadd.f32 %v401, %v442
        %v459 = vadd.f32 %v402, %v443
        %v460 = vadd.f32 %v403, %v444
        %v461 = vadd.f32 %v404, %v445
        %v462 = vadd.f32 %v405, %v446
        %v463 = vld [vmem:[%s408 + $0x2] sm:$0xff]
        %v464 = vld [vmem:[%s408 + $0xa] sm:$0xff]
        %v465 = vld [vmem:[%s408 + $0x1a] sm:$0xff]
        %v466 = vld [vmem:[%s408 + $0x22] sm:$0xff]
        %v467 = vld [vmem:[%s408 + $0x32] sm:$0xff]
        %v468 = vld [vmem:[%s408 + $0x3a] sm:$0xff]
        %v469 = vld [vmem:[%s408 + $0x4a] sm:$0xff]
        %v470 = vld [vmem:[%s408 + $0x52] sm:$0xff]
        %v471 = vld [vmem:[%s408 + $0x62] sm:$0xff]
        %v472 = vld [vmem:[%s408 + $0x6a] sm:$0xff]
        %v473 = vld [vmem:[%s408 + $0x7a] sm:$0xff]
        %v474 = vld [vmem:[%s408 + $0x82] sm:$0xff]
        %v475 = vld [vmem:[%s408 + $0x92] sm:$0xff]
        %v476 = vld [vmem:[%s408 + $0x9a] sm:$0xff]
        %v477 = vld [vmem:[%s408 + $0xaa] sm:$0xff]
        %v478 = vld [vmem:[%s408 + $0xb2] sm:$0xff]
        %v480 = vlaneseq
        %v481 = vshrl.u32 %v480, 7
        %v482 = vsub.s32 0, %v481
        %v483 = vrot.slane %v249, %v482
        %v485 = vmul.f32 %v463, %v483
        %v486 = vmul.f32 %v464, %v483
        %v487 = vmul.f32 %v465, %v483
        %v488 = vmul.f32 %v466, %v483
        %v489 = vmul.f32 %v467, %v483
        %v490 = vmul.f32 %v468, %v483
        %v491 = vmul.f32 %v469, %v483
        %v492 = vmul.f32 %v470, %v483
        %v493 = vmul.f32 %v471, %v483
        %v494 = vmul.f32 %v472, %v483
        %v495 = vmul.f32 %v473, %v483
        %v496 = vmul.f32 %v474, %v483
        %v497 = vmul.f32 %v475, %v483
        %v498 = vmul.f32 %v476, %v483
        %v499 = vmul.f32 %v477, %v483
        %v500 = vmul.f32 %v478, %v483
        %v501 = vadd.f32 %v447, %v485
        %v502 = vadd.f32 %v448, %v486
        %v503 = vadd.f32 %v449, %v487
        %v504 = vadd.f32 %v450, %v488
        %v505 = vadd.f32 %v451, %v489
        %v506 = vadd.f32 %v452, %v490
        %v507 = vadd.f32 %v453, %v491
        %v508 = vadd.f32 %v454, %v492
        %v509 = vadd.f32 %v455, %v493
        %v510 = vadd.f32 %v456, %v494
        %v511 = vadd.f32 %v457, %v495
        %v512 = vadd.f32 %v458, %v496
        %v513 = vadd.f32 %v459, %v497
        %v514 = vadd.f32 %v460, %v498
        %v515 = vadd.f32 %v461, %v499
        %v516 = vadd.f32 %v462, %v500
        %v517 = vld [vmem:[%s408 + $0x4] sm:$0xff]
        %v518 = vld [vmem:[%s408 + $0xc] sm:$0xff]
        %v519 = vld [vmem:[%s408 + $0x1c] sm:$0xff]
        %v520 = vld [vmem:[%s408 + $0x24] sm:$0xff]
        %v521 = vld [vmem:[%s408 + $0x34] sm:$0xff]
        %v522 = vld [vmem:[%s408 + $0x3c] sm:$0xff]
        %v523 = vld [vmem:[%s408 + $0x4c] sm:$0xff]
        %v524 = vld [vmem:[%s408 + $0x54] sm:$0xff]
        %v525 = vld [vmem:[%s408 + $0x64] sm:$0xff]
        %v526 = vld [vmem:[%s408 + $0x6c] sm:$0xff]
        %v527 = vld [vmem:[%s408 + $0x7c] sm:$0xff]
        %v528 = vld [vmem:[%s408 + $0x84] sm:$0xff]
        %v529 = vld [vmem:[%s408 + $0x94] sm:$0xff]
        %v530 = vld [vmem:[%s408 + $0x9c] sm:$0xff]
        %v531 = vld [vmem:[%s408 + $0xac] sm:$0xff]
        %v532 = vld [vmem:[%s408 + $0xb4] sm:$0xff]
        %v534 = vlaneseq
        %v535 = vshrl.u32 %v534, 7
        %v536 = vsub.s32 0, %v535
        %v537 = vrot.slane %v251, %v536
        %v539 = vmul.f32 %v517, %v537
        %v540 = vmul.f32 %v518, %v537
        %v541 = vmul.f32 %v519, %v537
        %v542 = vmul.f32 %v520, %v537
        %v543 = vmul.f32 %v521, %v537
        %v544 = vmul.f32 %v522, %v537
        %v545 = vmul.f32 %v523, %v537
        %v546 = vmul.f32 %v524, %v537
        %v547 = vmul.f32 %v525, %v537
        %v548 = vmul.f32 %v526, %v537
        %v549 = vmul.f32 %v527, %v537
        %v550 = vmul.f32 %v528, %v537
        %v551 = vmul.f32 %v529, %v537
        %v552 = vmul.f32 %v530, %v537
        %v553 = vmul.f32 %v531, %v537
        %v554 = vmul.f32 %v532, %v537
        %v555 = vadd.f32 %v501, %v539
        %v556 = vadd.f32 %v502, %v540
        %v557 = vadd.f32 %v503, %v541
        %v558 = vadd.f32 %v504, %v542
        %v559 = vadd.f32 %v505, %v543
        %v560 = vadd.f32 %v506, %v544
        %v561 = vadd.f32 %v507, %v545
        %v562 = vadd.f32 %v508, %v546
        %v563 = vadd.f32 %v509, %v547
        %v564 = vadd.f32 %v510, %v548
        %v565 = vadd.f32 %v511, %v549
        %v566 = vadd.f32 %v512, %v550
        %v567 = vadd.f32 %v513, %v551
        %v568 = vadd.f32 %v514, %v552
        %v569 = vadd.f32 %v515, %v553
        %v570 = vadd.f32 %v516, %v554
        %s571 = sadd.s32 %s239, 4
        %s572 = smul.u32 %s571, 24
        %s573 = scalar_lea.vmem %s236, %s572
        %v574 = vld [vmem:[%s573] sm:$0xff]
        %v575 = vld [vmem:[%s573 + $0x8] sm:$0xff]
        %v576 = vld [vmem:[%s573 + $0x18] sm:$0xff]
        %v577 = vld [vmem:[%s573 + $0x20] sm:$0xff]
        %v578 = vld [vmem:[%s573 + $0x30] sm:$0xff]
        %v579 = vld [vmem:[%s573 + $0x38] sm:$0xff]
        %v580 = vld [vmem:[%s573 + $0x48] sm:$0xff]
        %v581 = vld [vmem:[%s573 + $0x50] sm:$0xff]
        %v582 = vld [vmem:[%s573 + $0x60] sm:$0xff]
        %v583 = vld [vmem:[%s573 + $0x68] sm:$0xff]
        %v584 = vld [vmem:[%s573 + $0x78] sm:$0xff]
        %v585 = vld [vmem:[%s573 + $0x80] sm:$0xff]
        %v586 = vld [vmem:[%s573 + $0x90] sm:$0xff]
        %v587 = vld [vmem:[%s573 + $0x98] sm:$0xff]
        %v588 = vld [vmem:[%s573 + $0xa8] sm:$0xff]
        %v589 = vld [vmem:[%s573 + $0xb0] sm:$0xff]
        %v591 = vlaneseq
        %v592 = vshrl.u32 %v591, 7
        %v593 = vsub.s32 0, %v592
        %v594 = vrot.slane %v253, %v593
        %v596 = vmul.f32 %v574, %v594
        %v597 = vmul.f32 %v575, %v594
        %v598 = vmul.f32 %v576, %v594
        %v599 = vmul.f32 %v577, %v594
        %v600 = vmul.f32 %v578, %v594
        %v601 = vmul.f32 %v579, %v594
        %v602 = vmul.f32 %v580, %v594
        %v603 = vmul.f32 %v581, %v594
        %v604 = vmul.f32 %v582, %v594
        %v605 = vmul.f32 %v583, %v594
        %v606 = vmul.f32 %v584, %v594
        %v607 = vmul.f32 %v585, %v594
        %v608 = vmul.f32 %v586, %v594
        %v609 = vmul.f32 %v587, %v594
        %v610 = vmul.f32 %v588, %v594
        %v611 = vmul.f32 %v589, %v594
        %v612 = vadd.f32 %v555, %v596
        %v613 = vadd.f32 %v556, %v597
        %v614 = vadd.f32 %v557, %v598
        %v615 = vadd.f32 %v558, %v599
        %v616 = vadd.f32 %v559, %v600
        %v617 = vadd.f32 %v560, %v601
        %v618 = vadd.f32 %v561, %v602
        %v619 = vadd.f32 %v562, %v603
        %v620 = vadd.f32 %v563, %v604
        %v621 = vadd.f32 %v564, %v605
        %v622 = vadd.f32 %v565, %v606
        %v623 = vadd.f32 %v566, %v607
        %v624 = vadd.f32 %v567, %v608
        %v625 = vadd.f32 %v568, %v609
        %v626 = vadd.f32 %v569, %v610
        %v627 = vadd.f32 %v570, %v611
        %v628 = vld [vmem:[%s573 + $0x2] sm:$0xff]
        %v629 = vld [vmem:[%s573 + $0xa] sm:$0xff]
        %v630 = vld [vmem:[%s573 + $0x1a] sm:$0xff]
        %v631 = vld [vmem:[%s573 + $0x22] sm:$0xff]
        %v632 = vld [vmem:[%s573 + $0x32] sm:$0xff]
        %v633 = vld [vmem:[%s573 + $0x3a] sm:$0xff]
        %v634 = vld [vmem:[%s573 + $0x4a] sm:$0xff]
        %v635 = vld [vmem:[%s573 + $0x52] sm:$0xff]
        %v636 = vld [vmem:[%s573 + $0x62] sm:$0xff]
        %v637 = vld [vmem:[%s573 + $0x6a] sm:$0xff]
        %v638 = vld [vmem:[%s573 + $0x7a] sm:$0xff]
        %v639 = vld [vmem:[%s573 + $0x82] sm:$0xff]
        %v640 = vld [vmem:[%s573 + $0x92] sm:$0xff]
        %v641 = vld [vmem:[%s573 + $0x9a] sm:$0xff]
        %v642 = vld [vmem:[%s573 + $0xaa] sm:$0xff]
        %v643 = vld [vmem:[%s573 + $0xb2] sm:$0xff]
        %v645 = vlaneseq
        %v646 = vshrl.u32 %v645, 7
        %v647 = vsub.s32 0, %v646
        %v648 = vrot.slane %v255, %v647
        %v650 = vmul.f32 %v628, %v648
        %v651 = vmul.f32 %v629, %v648
        %v652 = vmul.f32 %v630, %v648
        %v653 = vmul.f32 %v631, %v648
        %v654 = vmul.f32 %v632, %v648
        %v655 = vmul.f32 %v633, %v648
        %v656 = vmul.f32 %v634, %v648
        %v657 = vmul.f32 %v635, %v648
        %v658 = vmul.f32 %v636, %v648
        %v659 = vmul.f32 %v637, %v648
        %v660 = vmul.f32 %v638, %v648
        %v661 = vmul.f32 %v639, %v648
        %v662 = vmul.f32 %v640, %v648
        %v663 = vmul.f32 %v641, %v648
        %v664 = vmul.f32 %v642, %v648
        %v665 = vmul.f32 %v643, %v648
        %v666 = vadd.f32 %v612, %v650
        %v667 = vadd.f32 %v613, %v651
        %v668 = vadd.f32 %v614, %v652
        %v669 = vadd.f32 %v615, %v653
        %v670 = vadd.f32 %v616, %v654
        %v671 = vadd.f32 %v617, %v655
        %v672 = vadd.f32 %v618, %v656
        %v673 = vadd.f32 %v619, %v657
        %v674 = vadd.f32 %v620, %v658
        %v675 = vadd.f32 %v621, %v659
        %v676 = vadd.f32 %v622, %v660
        %v677 = vadd.f32 %v623, %v661
        %v678 = vadd.f32 %v624, %v662
        %v679 = vadd.f32 %v625, %v663
        %v680 = vadd.f32 %v626, %v664
        %v681 = vadd.f32 %v627, %v665
        %v682 = vld [vmem:[%s573 + $0x4] sm:$0xff]
        %v683 = vld [vmem:[%s573 + $0xc] sm:$0xff]
        %v684 = vld [vmem:[%s573 + $0x1c] sm:$0xff]
        %v685 = vld [vmem:[%s573 + $0x24] sm:$0xff]
        %v686 = vld [vmem:[%s573 + $0x34] sm:$0xff]
        %v687 = vld [vmem:[%s573 + $0x3c] sm:$0xff]
        %v688 = vld [vmem:[%s573 + $0x4c] sm:$0xff]
        %v689 = vld [vmem:[%s573 + $0x54] sm:$0xff]
        %v690 = vld [vmem:[%s573 + $0x64] sm:$0xff]
        %v691 = vld [vmem:[%s573 + $0x6c] sm:$0xff]
        %v692 = vld [vmem:[%s573 + $0x7c] sm:$0xff]
        %v693 = vld [vmem:[%s573 + $0x84] sm:$0xff]
        %v694 = vld [vmem:[%s573 + $0x94] sm:$0xff]
        %v695 = vld [vmem:[%s573 + $0x9c] sm:$0xff]
        %v696 = vld [vmem:[%s573 + $0xac] sm:$0xff]
        %v697 = vld [vmem:[%s573 + $0xb4] sm:$0xff]
        %v699 = vlaneseq
        %v700 = vshrl.u32 %v699, 7
        %v701 = vsub.s32 0, %v700
        %v702 = vrot.slane %v257, %v701
        %v704 = vmul.f32 %v682, %v702
        %v705 = vmul.f32 %v683, %v702
        %v706 = vmul.f32 %v684, %v702
        %v707 = vmul.f32 %v685, %v702
        %v708 = vmul.f32 %v686, %v702
        %v709 = vmul.f32 %v687, %v702
        %v710 = vmul.f32 %v688, %v702
        %v711 = vmul.f32 %v689, %v702
        %v712 = vmul.f32 %v690, %v702
        %v713 = vmul.f32 %v691, %v702
        %v714 = vmul.f32 %v692, %v702
        %v715 = vmul.f32 %v693, %v702
        %v716 = vmul.f32 %v694, %v702
        %v717 = vmul.f32 %v695, %v702
        %v718 = vmul.f32 %v696, %v702
        %v719 = vmul.f32 %v697, %v702
        %v720 = vadd.f32 %v666, %v704
        %v721 = vadd.f32 %v667, %v705
        %v722 = vadd.f32 %v668, %v706
        %v723 = vadd.f32 %v669, %v707
        %v724 = vadd.f32 %v670, %v708
        %v725 = vadd.f32 %v671, %v709
        %v726 = vadd.f32 %v672, %v710
        %v727 = vadd.f32 %v673, %v711
        %v728 = vadd.f32 %v674, %v712
        %v729 = vadd.f32 %v675, %v713
        %v730 = vadd.f32 %v676, %v714
        %v731 = vadd.f32 %v677, %v715
        %v732 = vadd.f32 %v678, %v716
        %v733 = vadd.f32 %v679, %v717
        %v734 = vadd.f32 %v680, %v718
        %v735 = vadd.f32 %v681, %v719
        %v737 = vlaneseq
        %v738 = vshrl.u32 %v737, 7
        %v739 = vsub.s32 0, %v738
        %v740 = vrot.slane %v240, %v739
        %v742 = vadd.f32 %v720, %v740
        %v743 = vadd.f32 %v721, %v740
        %v744 = vadd.f32 %v722, %v740
        %v745 = vadd.f32 %v723, %v740
        %v746 = vadd.f32 %v724, %v740
        %v747 = vadd.f32 %v725, %v740
        %v748 = vadd.f32 %v726, %v740
        %v749 = vadd.f32 %v727, %v740
        %v750 = vadd.f32 %v728, %v740
        %v751 = vadd.f32 %v729, %v740
        %v752 = vadd.f32 %v730, %v740
        %v753 = vadd.f32 %v731, %v740
        %v754 = vadd.f32 %v732, %v740
        %v755 = vadd.f32 %v733, %v740
        %v756 = vadd.f32 %v734, %v740
        %v757 = vadd.f32 %v735, %v740
        %v758 = vpack.c.bf16 %v743, %v742
        %v759 = vpack.c.bf16 %v745, %v744
        %v760 = vpack.c.bf16 %v747, %v746
        %v761 = vpack.c.bf16 %v749, %v748
        %v762 = vpack.c.bf16 %v751, %v750
        %v763 = vpack.c.bf16 %v753, %v752
        %v764 = vpack.c.bf16 %v755, %v754
        %v765 = vpack.c.bf16 %v757, %v756
        %766 = vst [vmem:[#allocation2] sm:$0xff] %v758
        %767 = vst [vmem:[#allocation2 + $0x8] sm:$0xff] %v759
        %768 = vst [vmem:[#allocation2 + $0x10] sm:$0xff] %v760
        %769 = vst [vmem:[#allocation2 + $0x18] sm:$0xff] %v761
        %770 = vst [vmem:[#allocation2 + $0x20] sm:$0xff] %v762
        %771 = vst [vmem:[#allocation2 + $0x28] sm:$0xff] %v763
        %772 = vst [vmem:[#allocation2 + $0x30] sm:$0xff] %v764
        %773 = vst [vmem:[#allocation2 + $0x38] sm:$0xff] %v765
        %v774 = vld [vmem:[#allocation2] sm:$0xff]
        %v775 = vld [vmem:[#allocation2 + $0x8] sm:$0xff]
        %v776 = vld [vmem:[#allocation2 + $0x10] sm:$0xff]
        %v777 = vld [vmem:[#allocation2 + $0x18] sm:$0xff]
        %v778 = vld [vmem:[#allocation2 + $0x20] sm:$0xff]
        %v779 = vld [vmem:[#allocation2 + $0x28] sm:$0xff]
        %v780 = vld [vmem:[#allocation2 + $0x30] sm:$0xff]
        %v781 = vld [vmem:[#allocation2 + $0x38] sm:$0xff]
        %v782 = vld [vmem:[%s3] sm:$0xf]
        %v783 = vld [vmem:[%s3 + $0x4] sm:$0xf]
        %v784 = vld [vmem:[%s3 + $0x8] sm:$0xf]
        %v785 = vld [vmem:[%s3 + $0xc] sm:$0xf]
        %v786 = vld [vmem:[%s3 + $0x10] sm:$0xf]
        %v787 = vld [vmem:[%s3 + $0x14] sm:$0xf]
        %v788 = vld [vmem:[%s3 + $0x18] sm:$0xf]
        %v789 = vld [vmem:[%s3 + $0x1c] sm:$0xf]
        %v790 = vld [vmem:[%s3 + $0x20] sm:$0xf]
        %v791 = vld [vmem:[%s3 + $0x24] sm:$0xf]
        %v792 = vld [vmem:[%s3 + $0x28] sm:$0xf]
        %v793 = vld [vmem:[%s3 + $0x2c] sm:$0xf]
        %v794 = vld [vmem:[%s3 + $0x30] sm:$0xf]
        %v795 = vld [vmem:[%s3 + $0x34] sm:$0xf]
        %v796 = vld [vmem:[%s3 + $0x38] sm:$0xf]
        %v797 = vld [vmem:[%s3 + $0x3c] sm:$0xf]
        %v798 = vld [vmem:[%s4] sm:$0x1]
        %v800 = vlaneseq
        %v801 = vshrl.u32 %v800, 7
        %v802 = vsub.s32 0, %v801
        %v803 = vrot.slane %v798, %v802
        %v821 = vunpack.c.l.b16 %v782
        %v822 = vunpack.c.l.b16 %v783
        %v823 = vunpack.c.l.b16 %v784
        %v824 = vunpack.c.l.b16 %v785
        %v825 = vunpack.c.l.b16 %v786
        %v826 = vunpack.c.l.b16 %v787
        %v827 = vunpack.c.l.b16 %v788
        %v828 = vunpack.c.l.b16 %v789
        %v829 = vunpack.c.l.b16 %v790
        %v830 = vunpack.c.l.b16 %v791
        %v831 = vunpack.c.l.b16 %v792
        %v832 = vunpack.c.l.b16 %v793
        %v833 = vunpack.c.l.b16 %v794
        %v834 = vunpack.c.l.b16 %v795
        %v835 = vunpack.c.l.b16 %v796
        %v836 = vunpack.c.l.b16 %v797
        %v837 = vpack.c.b16 %v822, %v821
        %v838 = vpack.c.b16 %v824, %v823
        %v839 = vpack.c.b16 %v826, %v825
        %v840 = vpack.c.b16 %v828, %v827
        %v841 = vpack.c.b16 %v830, %v829
        %v842 = vpack.c.b16 %v832, %v831
        %v843 = vpack.c.b16 %v834, %v833
        %v844 = vpack.c.b16 %v836, %v835
        %853 = vmatprep.subr.bf16.mxu0 0
        %854 = vmatpush1.bf16.msra.mxu0 %v837
        %855 = vmatprep.subr.bf16.mxu0 0
        %856 = vmatpush1.bf16.msra.mxu0 %v838
        %857 = vmatprep.subr.bf16.mxu0 0
        %858 = vmatpush1.bf16.msra.mxu0 %v839
        %859 = vmatprep.subr.bf16.mxu0 0
        %860 = vmatpush1.bf16.msra.mxu0 %v840
        %861 = vmatprep.subr.bf16.mxu0 0
        %862 = vmatpush1.bf16.msra.mxu0 %v841
        %863 = vmatprep.subr.bf16.mxu0 0
        %864 = vmatpush1.bf16.msra.mxu0 %v842
        %865 = vmatprep.subr.bf16.mxu0 0
        %866 = vmatpush1.bf16.msra.mxu0 %v843
        %867 = vmatprep.subr.bf16.mxu0 0
        %868 = vmatpush1.bf16.msra.mxu0 %v844
        %869 = vmatprep.subr.bf16.mxu0 0
        %870 = vmatpush1.bf16.msra.mxu0 0
        %871 = vmatprep.subr.bf16.mxu0 0
        %872 = vmatpush1.bf16.msra.mxu0 0
        %873 = vmatprep.subr.bf16.mxu0 0
        %874 = vmatpush1.bf16.msra.mxu0 0
        %875 = vmatprep.subr.bf16.mxu0 0
        %876 = vmatpush1.bf16.msra.mxu0 0
        %877 = vmatprep.subr.bf16.mxu0 0
        %878 = vmatpush1.bf16.msra.mxu0 0
        %879 = vmatprep.subr.bf16.mxu0 0
        %880 = vmatpush1.bf16.msra.mxu0 0
        %881 = vmatprep.subr.bf16.mxu0 0
        %882 = vmatpush1.bf16.msra.mxu0 0
        %883 = vmatprep.subr.bf16.mxu0 0
        %884 = vmatpush1.bf16.msra.mxu0 0
        %885 = vmatprep.mubr.bf16.mxu0 0
        %886 = vmatmul.mubr.bf16.gmra.mrb[0].mxu0 %v774
        %v887 = vpop.f32.mrb[0].mxu0
        %v888 = vadd.f32 %v803, %v887
        %v889 = vpop.f32.mrb[0].mxu0
        %v890 = vpop.f32.mrb[0].mxu0
        %v891 = vadd.f32 %v803, %v890
        %v892 = vpop.f32.mrb[0].mxu0
        %893 = vmatprep.mubr.bf16.mxu0 0
        %894 = vmatmul.mubr.bf16.gmra.mrb[0].mxu0 %v775
        %v895 = vpop.f32.mrb[0].mxu0
        %v896 = vadd.f32 %v803, %v895
        %v897 = vpop.f32.mrb[0].mxu0
        %v898 = vpop.f32.mrb[0].mxu0
        %v899 = vadd.f32 %v803, %v898
        %v900 = vpop.f32.mrb[0].mxu0
        %901 = vmatprep.mubr.bf16.mxu0 0
        %902 = vmatmul.mubr.bf16.gmra.mrb[0].mxu0 %v776
        %v903 = vpop.f32.mrb[0].mxu0
        %v904 = vadd.f32 %v803, %v903
        %v905 = vpop.f32.mrb[0].mxu0
        %v906 = vpop.f32.mrb[0].mxu0
        %v907 = vadd.f32 %v803, %v906
        %v908 = vpop.f32.mrb[0].mxu0
        %909 = vmatprep.mubr.bf16.mxu0 0
        %910 = vmatmul.mubr.bf16.gmra.mrb[0].mxu0 %v777
        %v911 = vpop.f32.mrb[0].mxu0
        %v912 = vadd.f32 %v803, %v911
        %v913 = vpop.f32.mrb[0].mxu0
        %v914 = vpop.f32.mrb[0].mxu0
        %v915 = vadd.f32 %v803, %v914
        %v916 = vpop.f32.mrb[0].mxu0
        %917 = vmatprep.mubr.bf16.mxu0 0
        %918 = vmatmul.mubr.bf16.gmra.mrb[0].mxu0 %v778
        %v919 = vpop.f32.mrb[0].mxu0
        %v920 = vadd.f32 %v803, %v919
        %v921 = vpop.f32.mrb[0].mxu0
        %v922 = vpop.f32.mrb[0].mxu0
        %v923 = vadd.f32 %v803, %v922
        %v924 = vpop.f32.mrb[0].mxu0
        %925 = vmatprep.mubr.bf16.mxu0 0
        %926 = vmatmul.mubr.bf16.gmra.mrb[0].mxu0 %v779
        %v927 = vpop.f32.mrb[0].mxu0
        %v928 = vadd.f32 %v803, %v927
        %v929 = vpop.f32.mrb[0].mxu0
        %v930 = vpop.f32.mrb[0].mxu0
        %v931 = vadd.f32 %v803, %v930
        %v932 = vpop.f32.mrb[0].mxu0
        %933 = vmatprep.mubr.bf16.mxu0 0
        %934 = vmatmul.mubr.bf16.gmra.mrb[0].mxu0 %v780
        %v935 = vpop.f32.mrb[0].mxu0
        %v936 = vadd.f32 %v803, %v935
        %v937 = vpop.f32.mrb[0].mxu0
        %v938 = vpop.f32.mrb[0].mxu0
        %v939 = vadd.f32 %v803, %v938
        %v940 = vpop.f32.mrb[0].mxu0
        %941 = vmatprep.mubr.bf16.mxu0 0
        %942 = vmatmul.mubr.bf16.gmra.mrb[0].mxu0 %v781
        %v943 = vpop.f32.mrb[0].mxu0
        %v944 = vadd.f32 %v803, %v943
        %v945 = vpop.f32.mrb[0].mxu0
        %v946 = vpop.f32.mrb[0].mxu0
        %v947 = vadd.f32 %v803, %v946
        %v948 = vpop.f32.mrb[0].mxu0
        %949 = vdwg.mxu0
        %950 = vst [vmem:[%s231] sm:$0xff] %v888
        %951 = vst [vmem:[%s231 + $0x8] sm:$0xff] %v891
        %952 = vst [vmem:[%s231 + $0x10] sm:$0xff] %v896
        %953 = vst [vmem:[%s231 + $0x18] sm:$0xff] %v899
        %954 = vst [vmem:[%s231 + $0x20] sm:$0xff] %v904
        %955 = vst [vmem:[%s231 + $0x28] sm:$0xff] %v907
        %956 = vst [vmem:[%s231 + $0x30] sm:$0xff] %v912
        %957 = vst [vmem:[%s231 + $0x38] sm:$0xff] %v915
        %958 = vst [vmem:[%s231 + $0x40] sm:$0xff] %v920
        %959 = vst [vmem:[%s231 + $0x48] sm:$0xff] %v923
        %960 = vst [vmem:[%s231 + $0x50] sm:$0xff] %v928
        %961 = vst [vmem:[%s231 + $0x58] sm:$0xff] %v931
        %962 = vst [vmem:[%s231 + $0x60] sm:$0xff] %v936
        %963 = vst [vmem:[%s231 + $0x68] sm:$0xff] %v939
        %964 = vst [vmem:[%s231 + $0x70] sm:$0xff] %v944
        %965 = vst [vmem:[%s231 + $0x78] sm:$0xff] %v947
        %s966 = sand.u32 %s151, 1
        %s967 = scalar_lea.sflag [#allocation4], %s966
        %s968 = sand.u32 %s151, 1
        %s969 = smul.addr %s968, 128
        %s970 = scalar_lea.vmem [#allocation3], %s969
        // Predicated region
        $region41: #{tpu_custom_call.1} parent=39 // pred_check
          %p971 = pneg %p161
        $region42: #{tpu_custom_call.1} parent=39 // pred_check_branch
          %973 = sbr.rel (%p971) target = $region44
        $region43: #{tpu_custom_call.1} parent=39 // pred_region
          %s974 = smul.u32 8, %s24
          %s976 = ssub.s32 2048, 2048
          %977 = vsyncadd %s967, %s976
          %s978 = smul.addr %s974, 2
          %s979 = smul.addr %s23, 32
          %s980 = sadd.s32 %s978, %s979
          %s981 = smul.addr %s980, 128
          %s982 = scalar_lea.hbm %s5, %s981
          %s983 = sshll.u32 %s970, 4
          %s984 = int_to_ptr.vmem [resolvable:$true] %s983
          %989 = dma.vmem_to_hbm [thread:$0]  %s984, 2048, %s982, %s967, 128, 128, 8
        $region44: #{tpu_custom_call.1} parent=39 // pred_fallthru
          _
      $region40: #{tpu_custom_call.1} parent=5 // pred_fallthru
        _
      %p990 = scmp.le.s32.totalorder 2, %s14
      // Predicated region
      $region45: #{tpu_custom_call.1} parent=5 // pred_check
        %p991 = pneg %p990
      $region46: #{tpu_custom_call.1} parent=5 // pred_check_branch
        %993 = sbr.rel (%p991) target = $region48
      $region47: #{tpu_custom_call.1} parent=5 // pred_region
        %s994 = ssub.s32 %s14, 2
        // Predicated region
        $region49: #{tpu_custom_call.1} parent=47 // pred_check
          %p995 = pneg %p167
        $region50: #{tpu_custom_call.1} parent=47 // pred_check_branch
          %997 = sbr.rel (%p995) target = $region52
        $region51: #{tpu_custom_call.1} parent=47 // pred_region
          %s998 = sand.u32 %s152, 1
          %s999 = scalar_lea.sflag [#allocation4], %s998
          %s1000 = sand.u32 %s152, 1
          %s1001 = smul.addr %s1000, 128
          %s1002 = scalar_lea.vmem [#allocation3], %s1001
          %1003 = dma.done %s999, 2048
        $region52: #{tpu_custom_call.1} parent=47 // pred_fallthru
          _
      $region48: #{tpu_custom_call.1} parent=5 // pred_fallthru
        _
    $region6: #{tpu_custom_call.1} parent=1 // loop_footer
      %s18 = sadd.s32 1, %s14
    $region7: #{tpu_custom_call.1} parent=1 // loop_footer_branch
      %13 = sbr.rel target = $region3
    $region8: #{tpu_custom_call.1} parent=1 // loop_exit
      _
    %1004 = vsyncpa [#allocation4], 1
    %s1005 = scalar_lea.sflag [#allocation4], 1
    %1006 = vsyncpa %s1005, 1

// kernel: tpu_custom_call.1
$region0: #{tpu_custom_call.1}
  #allocation0 [shape = 'u32[]', space=smem, size = 0x4, offset = 0x4, fixed_abs, tag = 'smem constant byte address 0x4 - core index']
  #allocation1 [shape = 'u32[144,128]{1,0:T(1,128)}', space=vmem, size = 0x12000, scoped, tag = 'internal scratch']
  #allocation2 [shape = 'bf16[8,16,128]{2,1,0:T(16,128)(2,1)}', space=vmem, size = 0x8000, scoped, tag = 'scratch operand']
  %s0 = inlined_call_operand.vmem [shape: f32[2,20,20,128], index: 0, kind: input, shape index: {}]
  %s1 = inlined_call_operand.vmem [shape: f32[9,1,128], index: 1, kind: input, shape index: {}]
  %s2 = inlined_call_operand.vmem [shape: f32[1,128], index: 2, kind: input, shape index: {}]
  %s3 = inlined_call_operand.vmem [shape: bf16[128,128], index: 3, kind: input, shape index: {}]
  %s4 = inlined_call_operand.vmem [shape: f32[1,128], index: 4, kind: input, shape index: {}]
  %s5 = inlined_call_operand.hbm [shape: f32[2,16,16,128], index: 5, kind: output, shape index: {}]
  %s6 = sld [smem:[#allocation0]]
  $region53: #{tpu_custom_call.1} parent=0
    _
  %s8 = ssub.s32 1, %s6
  %s9 = scalar_select 0, %s8, %s6
  $region1: #{tpu_custom_call.1} parent=0
    #allocation3 [shape = 'u8[131072]{0}', space=vmem, size = 0x20000, scoped, tag = 'output window, operand 0']
    #allocation4 [shape = 's32[2]{0}', space=sflag, size = 0x8, scoped, tag = 'scoped memory for tpu_custom_call.1']
    %10 = vsyncpa [#allocation4], 0
    %s11 = scalar_lea.sflag [#allocation4], 1
    %12 = vsyncpa %s11, 0
    loop: start=0, step=1, limit=6
    $region2: #{tpu_custom_call.1} parent=1 // loop_pre_header
      _
    $region3: #{tpu_custom_call.1} parent=1 // loop_header
      %s14 = sphi 0, %s18
      %p15 = scmp.ge.s32.totalorder %s14, 6
      %s21 = sphi 0, %s33
      %s22 = sphi 0, %s29
      %s23 = sphi 0, %s21
      %s24 = sphi 0, %s22
      %s25 = sphi 0, %s23
      %s26 = sphi 0, %s24
      %s36 = sphi 0, %s38
      %s39 = sphi 0, %s36
      %s40 = sphi 0, %s39
      %s56 = sphi 0, %s40
      %s60 = sphi 0, %s60
      %s62 = sphi 0, %s60
      %s63 = sphi 0, %s62
      %s77 = sphi 0, %s63
      %s81 = sphi 0, %s81
      %s83 = sphi 0, %s81
      %s84 = sphi 0, %s83
      %s98 = sphi 0, %s84
      %s102 = sphi 0, %s102
      %s104 = sphi 0, %s102
      %s105 = sphi 0, %s104
      %s119 = sphi 0, %s105
      %s123 = sphi 0, %s123
      %s125 = sphi 0, %s123
      %s126 = sphi 0, %s125
      %s140 = sphi 0, %s126
      %s148 = sphi 0, %s150
      %s151 = sphi 0, %s148
      %s152 = sphi 0, %s151
      %s168 = sphi 0, %s152
    $region4: #{tpu_custom_call.1} parent=1 // loop_header_branch
      %17 = sbr.rel (%p15) target = $region8
    $region5: #{tpu_custom_call.1} parent=1 // loop_body
      %s19 = ssub.s32 %s14, 1
      %s20 = ssub.s32 %s14, 2
      %s27 = sadd.s32 1, %s22
      %p28 = scmp.ge.s32.totalorder %s27, 2
      %s29 = scalar_select %p28, 0, %s27
      %s30 = sadd.s32 1, %s21
      %s31 = scalar_select %p28, %s30, %s21
      %p32 = scmp.ge.s32.totalorder %s31, 2
      %s33 = scalar_select %p32, 0, %s31
      %s34 = ssub.s32 %s21, %s33
      %p35 = scmp.eq.s32.totalorder %s34, 0
      %s37 = sadd.s32 %s36, 1
      %s38 = scalar_select %p35, %s36, %s37
      %p41 = pneg %p35
      %p42 = scmp.eq.s32.totalorder %s14, 3
      %p43 = por %p41, %p42
      %p44 = scmp.ne.s32.totalorder %s36, %s39
      %p45 = scmp.eq.s32.totalorder %s14, 0
      %p46 = por %p44, %p45
      %p47 = scmp.ne.s32.totalorder %s36, %s39
      %p48 = scmp.eq.s32.totalorder %s19, 3
      %p49 = por %p47, %p48
      %p50 = scmp.ne.s32.totalorder %s39, %s40
      %p51 = scmp.eq.s32.totalorder %s19, 0
      %p52 = por %p50, %p51
      %p53 = scmp.ne.s32.totalorder %s39, %s40
      %p54 = scmp.eq.s32.totalorder %s20, 3
      %p55 = por %p53, %p54
      %p57 = scmp.ne.s32.totalorder %s40, %s56
      %p58 = scmp.eq.s32.totalorder %s20, 0
      %p59 = por %p57, %p58
      %s61 = sadd.s32 %s60, 1
      %p64 = scmp.eq.s32.totalorder %s14, 3
      %p65 = scmp.ne.s32.totalorder %s60, %s62
      %p66 = scmp.eq.s32.totalorder %s14, 0
      %p67 = por %p65, %p66
      %p68 = scmp.ne.s32.totalorder %s60, %s62
      %p69 = scmp.eq.s32.totalorder %s19, 3
      %p70 = por %p68, %p69
      %p71 = scmp.ne.s32.totalorder %s62, %s63
      %p72 = scmp.eq.s32.totalorder %s19, 0
      %p73 = por %p71, %p72
      %p74 = scmp.ne.s32.totalorder %s62, %s63
      %p75 = scmp.eq.s32.totalorder %s20, 3
      %p76 = por %p74, %p75
      %p78 = scmp.ne.s32.totalorder %s63, %s77
      %p79 = scmp.eq.s32.totalorder %s20, 0
      %p80 = por %p78, %p79
      %s82 = sadd.s32 %s81, 1
      %p85 = scmp.eq.s32.totalorder %s14, 3
      %p86 = scmp.ne.s32.totalorder %s81, %s83
      %p87 = scmp.eq.s32.totalorder %s14, 0
      %p88 = por %p86, %p87
      %p89 = scmp.ne.s32.totalorder %s81, %s83
      %p90 = scmp.eq.s32.totalorder %s19, 3
      %p91 = por %p89, %p90
      %p92 = scmp.ne.s32.totalorder %s83, %s84
      %p93 = scmp.eq.s32.totalorder %s19, 0
      %p94 = por %p92, %p93
      %p95 = scmp.ne.s32.totalorder %s83, %s84
      %p96 = scmp.eq.s32.totalorder %s20, 3
      %p97 = por %p95, %p96
      %p99 = scmp.ne.s32.totalorder %s84, %s98
      %p100 = scmp.eq.s32.totalorder %s20, 0
      %p101 = por %p99, %p100
      %s103 = sadd.s32 %s102, 1
      %p106 = scmp.eq.s32.totalorder %s14, 3
      %p107 = scmp.ne.s32.totalorder %s102, %s104
      %p108 = scmp.eq.s32.totalorder %s14, 0
      %p109 = por %p107, %p108
      %p110 = scmp.ne.s32.totalorder %s102, %s104
      %p111 = scmp.eq.s32.totalorder %s19, 3
      %p112 = por %p110, %p111
      %p113 = scmp.ne.s32.totalorder %s104, %s105
      %p114 = scmp.eq.s32.totalorder %s19, 0
      %p115 = por %p113, %p114
      %p116 = scmp.ne.s32.totalorder %s104, %s105
      %p117 = scmp.eq.s32.totalorder %s20, 3
      %p118 = por %p116, %p117
      %p120 = scmp.ne.s32.totalorder %s105, %s119
      %p121 = scmp.eq.s32.totalorder %s20, 0
      %p122 = por %p120, %p121
      %s124 = sadd.s32 %s123, 1
      %p127 = scmp.eq.s32.totalorder %s14, 3
      %p128 = scmp.ne.s32.totalorder %s123, %s125
      %p129 = scmp.eq.s32.totalorder %s14, 0
      %p130 = por %p128, %p129
      %p131 = scmp.ne.s32.totalorder %s123, %s125
      %p132 = scmp.eq.s32.totalorder %s19, 3
      %p133 = por %p131, %p132
      %p134 = scmp.ne.s32.totalorder %s125, %s126
      %p135 = scmp.eq.s32.totalorder %s19, 0
      %p136 = por %p134, %p135
      %p137 = scmp.ne.s32.totalorder %s125, %s126
      %p138 = scmp.eq.s32.totalorder %s20, 3
      %p139 = por %p137, %p138
      %p141 = scmp.ne.s32.totalorder %s126, %s140
      %p142 = scmp.eq.s32.totalorder %s20, 0
      %p143 = por %p141, %p142
      %s144 = ssub.s32 %s21, %s33
      %s145 = ssub.s32 %s22, %s29
      %s146 = sor.u32 %s144, %s145
      %p147 = scmp.eq.s32.totalorder %s146, 0
      %s149 = sadd.s32 %s148, 1
      %s150 = scalar_select %p147, %s148, %s149
      %p153 = pneg %p147
      %p154 = scmp.eq.s32.totalorder %s14, 3
      %p155 = por %p153, %p154
      %p156 = scmp.ne.s32.totalorder %s148, %s151
      %p157 = scmp.eq.s32.totalorder %s14, 0
      %p158 = por %p156, %p157
      %p159 = scmp.ne.s32.totalorder %s148, %s151
      %p160 = scmp.eq.s32.totalorder %s19, 3
      %p161 = por %p159, %p160
      %p162 = scmp.ne.s32.totalorder %s151, %s152
      %p163 = scmp.eq.s32.totalorder %s19, 0
      %p164 = por %p162, %p163
      %p165 = scmp.ne.s32.totalorder %s151, %s152
      %p166 = scmp.eq.s32.totalorder %s20, 3
      %p167 = por %p165, %p166
      %p169 = scmp.ne.s32.totalorder %s152, %s168
      %p170 = scmp.eq.s32.totalorder %s20, 0
      %p171 = por %p169, %p170
      %p172 = scmp.le.s32.totalorder 1, %s14
      %p173 = scmp.lt.s32.totalorder %s14, 5
      %p174 = pnand %p172, %p173
      %p175 = pneg %p174
      // Predicated region
      $region9: #{tpu_custom_call.1} parent=5 // pred_check
        _
      $region10: #{tpu_custom_call.1} parent=5 // pred_check_branch
        %177 = sbr.rel (%p174) target = $region12
      $region11: #{tpu_custom_call.1} parent=5 // pred_region
        %s178 = ssub.s32 %s14, 1
        // Predicated region
        $region13: #{tpu_custom_call.1} parent=11 // pred_check
          %p179 = pneg %p73
        $region14: #{tpu_custom_call.1} parent=11 // pred_check_branch
          %181 = sbr.rel (%p179) target = $region16
        $region15: #{tpu_custom_call.1} parent=11 // pred_region
          _
        $region16: #{tpu_custom_call.1} parent=11 // pred_fallthru
          _
        // Predicated region
        $region17: #{tpu_custom_call.1} parent=11 // pred_check
          %p182 = pneg %p94
        $region18: #{tpu_custom_call.1} parent=11 // pred_check_branch
          %184 = sbr.rel (%p182) target = $region20
        $region19: #{tpu_custom_call.1} parent=11 // pred_region
          _
        $region20: #{tpu_custom_call.1} parent=11 // pred_fallthru
          _
        // Predicated region
        $region21: #{tpu_custom_call.1} parent=11 // pred_check
          %p185 = pneg %p115
        $region22: #{tpu_custom_call.1} parent=11 // pred_check_branch
          %187 = sbr.rel (%p185) target = $region24
        $region23: #{tpu_custom_call.1} parent=11 // pred_region
          _
        $region24: #{tpu_custom_call.1} parent=11 // pred_fallthru
          _
        // Predicated region
        $region25: #{tpu_custom_call.1} parent=11 // pred_check
          %p188 = pneg %p136
        $region26: #{tpu_custom_call.1} parent=11 // pred_check_branch
          %190 = sbr.rel (%p188) target = $region28
        $region27: #{tpu_custom_call.1} parent=11 // pred_region
          _
        $region28: #{tpu_custom_call.1} parent=11 // pred_fallthru
          _
      $region12: #{tpu_custom_call.1} parent=5 // pred_fallthru
        _
      %p191 = scmp.lt.s32.totalorder %s14, 4
      // Predicated region
      $region29: #{tpu_custom_call.1} parent=5 // pred_check
        %p192 = pneg %p191
      $region30: #{tpu_custom_call.1} parent=5 // pred_check_branch
        %194 = sbr.rel (%p192) target = $region32
      $region31: #{tpu_custom_call.1} parent=5 // pred_region
        // Predicated region
        $region33: #{tpu_custom_call.1} parent=31 // pred_check
          %p195 = pneg %p46
        $region34: #{tpu_custom_call.1} parent=31 // pred_check_branch
          %197 = sbr.rel (%p195) target = $region36
        $region35: #{tpu_custom_call.1} parent=31 // pred_region
          %p198 = scmp.lt.s32.totalorder %s21, 1
          %s199 = scalar_select %p198, %s21, 1
          %s200 = smul.addr %s199, 60
          %s201 = smul.addr %s200, 8
          %s202 = scalar_lea.vmem %s0, %s201
        $region36: #{tpu_custom_call.1} parent=31 // pred_fallthru
          _
      $region32: #{tpu_custom_call.1} parent=5 // pred_fallthru
        _
      %p203 = scmp.le.s32.totalorder 1, %s14
      %p204 = scmp.lt.s32.totalorder %s14, 5
      %p205 = pnand %p203, %p204
      %p206 = pneg %p205
      // Predicated region
      $region37: #{tpu_custom_call.1} parent=5 // pred_check
        _
      $region38: #{tpu_custom_call.1} parent=5 // pred_check_branch
        %208 = sbr.rel (%p205) target = $region40
      $region39: #{tpu_custom_call.1} parent=5 // pred_region
        %s209 = ssub.s32 %s14, 1
        %p210 = scmp.lt.s32.totalorder %s23, 1
        %s211 = scalar_select %p210, %s23, 1
        %s212 = smul.addr %s211, 60
        %s213 = smul.addr %s212, 8
        %s214 = scalar_lea.vmem %s0, %s213
        %p215 = pneg %p52
        %p216 = pneg %p49
        %p217 = pneg %p73
        %p218 = pneg %p70
        %p219 = pneg %p94
        %p220 = pneg %p91
        %p221 = pneg %p115
        %p222 = pneg %p112
        %p223 = pneg %p136
        %p224 = pneg %p133
        %p225 = pneg %p164
        %p226 = pneg %p161
        %s227 = sand.u32 %s151, 1
        %s228 = scalar_lea.sflag [#allocation4], %s227
        %s229 = sand.u32 %s151, 1
        %s230 = smul.addr %s229, 128
        %s231 = scalar_lea.vmem [#allocation3], %s230
        %p232 = scmp.lt.s32.totalorder %s23, 1
        %s233 = scalar_select %p232, %s23, 1
        %s234 = smul.addr %s233, 60
        %s235 = smul.addr %s234, 8
        %s236 = scalar_lea.vmem %s0, %s235
        %s237 = smul.u32 8, %s24
        %s239 = smul.u32 %s24, 8
        %v240 = vld [vmem:[%s2] sm:$0x1]
        %v241 = vld [vmem:[%s1] sm:$0x1]
        %s242 = scalar_lea.vmem %s1, 1
        %v243 = vld [vmem:[%s242] sm:$0x1]
        %s244 = scalar_lea.vmem %s1, 2
        %v245 = vld [vmem:[%s244] sm:$0x1]
        %s246 = scalar_lea.vmem %s1, 3
        %v247 = vld [vmem:[%s246] sm:$0x1]
        %s248 = scalar_lea.vmem %s1, 4
        %v249 = vld [vmem:[%s248] sm:$0x1]
        %s250 = scalar_lea.vmem %s1, 5
        %v251 = vld [vmem:[%s250] sm:$0x1]
        %s252 = scalar_lea.vmem %s1, 6
        %v253 = vld [vmem:[%s252] sm:$0x1]
        %s254 = scalar_lea.vmem %s1, 7
        %v255 = vld [vmem:[%s254] sm:$0x1]
        %s256 = scalar_lea.vmem %s1, 8
        %v257 = vld [vmem:[%s256] sm:$0x1]
        %s258 = smul.u32 %s239, 24
        %s259 = scalar_lea.vmem %s236, %s258
        %v260 = vld [vmem:[%s259] sm:$0xff]
        %v261 = vld [vmem:[%s259 + $0x8] sm:$0xff]
        %v262 = vld [vmem:[%s259 + $0x18] sm:$0xff]
        %v263 = vld [vmem:[%s259 + $0x20] sm:$0xff]
        %v264 = vld [vmem:[%s259 + $0x30] sm:$0xff]
        %v265 = vld [vmem:[%s259 + $0x38] sm:$0xff]
        %v266 = vld [vmem:[%s259 + $0x48] sm:$0xff]
        %v267 = vld [vmem:[%s259 + $0x50] sm:$0xff]
        %v268 = vld [vmem:[%s259 + $0x60] sm:$0xff]
        %v269 = vld [vmem:[%s259 + $0x68] sm:$0xff]
        %v270 = vld [vmem:[%s259 + $0x78] sm:$0xff]
        %v271 = vld [vmem:[%s259 + $0x80] sm:$0xff]
        %v272 = vld [vmem:[%s259 + $0x90] sm:$0xff]
        %v273 = vld [vmem:[%s259 + $0x98] sm:$0xff]
        %v274 = vld [vmem:[%s259 + $0xa8] sm:$0xff]
        %v275 = vld [vmem:[%s259 + $0xb0] sm:$0xff]
        %v277 = vlaneseq
        %v278 = vshrl.u32 %v277, 7
        %v279 = vsub.s32 0, %v278
        %v280 = vrot.slane %v241, %v279
        %v282 = vmul.f32 %v260, %v280
        %v283 = vmul.f32 %v261, %v280
        %v284 = vmul.f32 %v262, %v280
        %v285 = vmul.f32 %v263, %v280
        %v286 = vmul.f32 %v264, %v280
        %v287 = vmul.f32 %v265, %v280
        %v288 = vmul.f32 %v266, %v280
        %v289 = vmul.f32 %v267, %v280
        %v290 = vmul.f32 %v268, %v280
        %v291 = vmul.f32 %v269, %v280
        %v292 = vmul.f32 %v270, %v280
        %v293 = vmul.f32 %v271, %v280
        %v294 = vmul.f32 %v272, %v280
        %v295 = vmul.f32 %v273, %v280
        %v296 = vmul.f32 %v274, %v280
        %v297 = vmul.f32 %v275, %v280
        %v298 = vld [vmem:[%s259 + $0x2] sm:$0xff]
        %v299 = vld [vmem:[%s259 + $0xa] sm:$0xff]
        %v300 = vld [vmem:[%s259 + $0x1a] sm:$0xff]
        %v301 = vld [vmem:[%s259 + $0x22] sm:$0xff]
        %v302 = vld [vmem:[%s259 + $0x32] sm:$0xff]
        %v303 = vld [vmem:[%s259 + $0x3a] sm:$0xff]
        %v304 = vld [vmem:[%s259 + $0x4a] sm:$0xff]
        %v305 = vld [vmem:[%s259 + $0x52] sm:$0xff]
        %v306 = vld [vmem:[%s259 + $0x62] sm:$0xff]
        %v307 = vld [vmem:[%s259 + $0x6a] sm:$0xff]
        %v308 = vld [vmem:[%s259 + $0x7a] sm:$0xff]
        %v309 = vld [vmem:[%s259 + $0x82] sm:$0xff]
        %v310 = vld [vmem:[%s259 + $0x92] sm:$0xff]
        %v311 = vld [vmem:[%s259 + $0x9a] sm:$0xff]
        %v312 = vld [vmem:[%s259 + $0xaa] sm:$0xff]
        %v313 = vld [vmem:[%s259 + $0xb2] sm:$0xff]
        %v315 = vlaneseq
        %v316 = vshrl.u32 %v315, 7
        %v317 = vsub.s32 0, %v316
        %v318 = vrot.slane %v243, %v317
        %v320 = vmul.f32 %v298, %v318
        %v321 = vmul.f32 %v299, %v318
        %v322 = vmul.f32 %v300, %v318
        %v323 = vmul.f32 %v301, %v318
        %v324 = vmul.f32 %v302, %v318
        %v325 = vmul.f32 %v303, %v318
        %v326 = vmul.f32 %v304, %v318
        %v327 = vmul.f32 %v305, %v318
        %v328 = vmul.f32 %v306, %v318
        %v329 = vmul.f32 %v307, %v318
        %v330 = vmul.f32 %v308, %v318
        %v331 = vmul.f32 %v309, %v318
        %v332 = vmul.f32 %v310, %v318
        %v333 = vmul.f32 %v311, %v318
        %v334 = vmul.f32 %v312, %v318
        %v335 = vmul.f32 %v313, %v318
        %v336 = vadd.f32 %v282, %v320
        %v337 = vadd.f32 %v283, %v321
        %v338 = vadd.f32 %v284, %v322
        %v339 = vadd.f32 %v285, %v323
        %v340 = vadd.f32 %v286, %v324
        %v341 = vadd.f32 %v287, %v325
        %v342 = vadd.f32 %v288, %v326
        %v343 = vadd.f32 %v289, %v327
        %v344 = vadd.f32 %v290, %v328
        %v345 = vadd.f32 %v291, %v329
        %v346 = vadd.f32 %v292, %v330
        %v347 = vadd.f32 %v293, %v331
        %v348 = vadd.f32 %v294, %v332
        %v349 = vadd.f32 %v295, %v333
        %v350 = vadd.f32 %v296, %v334
        %v351 = vadd.f32 %v297, %v335
        %v352 = vld [vmem:[%s259 + $0x4] sm:$0xff]
        %v353 = vld [vmem:[%s259 + $0xc] sm:$0xff]
        %v354 = vld [vmem:[%s259 + $0x1c] sm:$0xff]
        %v355 = vld [vmem:[%s259 + $0x24] sm:$0xff]
        %v356 = vld [vmem:[%s259 + $0x34] sm:$0xff]
        %v357 = vld [vmem:[%s259 + $0x3c] sm:$0xff]
        %v358 = vld [vmem:[%s259 + $0x4c] sm:$0xff]
        %v359 = vld [vmem:[%s259 + $0x54] sm:$0xff]
        %v360 = vld [vmem:[%s259 + $0x64] sm:$0xff]
        %v361 = vld [vmem:[%s259 + $0x6c] sm:$0xff]
        %v362 = vld [vmem:[%s259 + $0x7c] sm:$0xff]
        %v363 = vld [vmem:[%s259 + $0x84] sm:$0xff]
        %v364 = vld [vmem:[%s259 + $0x94] sm:$0xff]
        %v365 = vld [vmem:[%s259 + $0x9c] sm:$0xff]
        %v366 = vld [vmem:[%s259 + $0xac] sm:$0xff]
        %v367 = vld [vmem:[%s259 + $0xb4] sm:$0xff]
        %v369 = vlaneseq
        %v370 = vshrl.u32 %v369, 7
        %v371 = vsub.s32 0, %v370
        %v372 = vrot.slane %v245, %v371
        %v374 = vmul.f32 %v352, %v372
        %v375 = vmul.f32 %v353, %v372
        %v376 = vmul.f32 %v354, %v372
        %v377 = vmul.f32 %v355, %v372
        %v378 = vmul.f32 %v356, %v372
        %v379 = vmul.f32 %v357, %v372
        %v380 = vmul.f32 %v358, %v372
        %v381 = vmul.f32 %v359, %v372
        %v382 = vmul.f32 %v360, %v372
        %v383 = vmul.f32 %v361, %v372
        %v384 = vmul.f32 %v362, %v372
        %v385 = vmul.f32 %v363, %v372
        %v386 = vmul.f32 %v364, %v372
        %v387 = vmul.f32 %v365, %v372
        %v388 = vmul.f32 %v366, %v372
        %v389 = vmul.f32 %v367, %v372
        %v390 = vadd.f32 %v336, %v374
        %v391 = vadd.f32 %v337, %v375
        %v392 = vadd.f32 %v338, %v376
        %v393 = vadd.f32 %v339, %v377
        %v394 = vadd.f32 %v340, %v378
        %v395 = vadd.f32 %v341, %v379
        %v396 = vadd.f32 %v342, %v380
        %v397 = vadd.f32 %v343, %v381
        %v398 = vadd.f32 %v344, %v382
        %v399 = vadd.f32 %v345, %v383
        %v400 = vadd.f32 %v346, %v384
        %v401 = vadd.f32 %v347, %v385
        %v402 = vadd.f32 %v348, %v386
        %v403 = vadd.f32 %v349, %v387
        %v404 = vadd.f32 %v350, %v388
        %v405 = vadd.f32 %v351, %v389
        %s406 = sadd.s32 %s239, 2
        %s407 = smul.u32 %s406, 24
        %s408 = scalar_lea.vmem %s236, %s407
        %v409 = vld [vmem:[%s408] sm:$0xff]
        %v410 = vld [vmem:[%s408 + $0x8] sm:$0xff]
        %v411 = vld [vmem:[%s408 + $0x18] sm:$0xff]
        %v412 = vld [vmem:[%s408 + $0x20] sm:$0xff]
        %v413 = vld [vmem:[%s408 + $0x30] sm:$0xff]
        %v414 = vld [vmem:[%s408 + $0x38] sm:$0xff]
        %v415 = vld [vmem:[%s408 + $0x48] sm:$0xff]
        %v416 = vld [vmem:[%s408 + $0x50] sm:$0xff]
        %v417 = vld [vmem:[%s408 + $0x60] sm:$0xff]
        %v418 = vld [vmem:[%s408 + $0x68] sm:$0xff]
        %v419 = vld [vmem:[%s408 + $0x78] sm:$0xff]
        %v420 = vld [vmem:[%s408 + $0x80] sm:$0xff]
        %v421 = vld [vmem:[%s408 + $0x90] sm:$0xff]
        %v422 = vld [vmem:[%s408 + $0x98] sm:$0xff]
        %v423 = vld [vmem:[%s408 + $0xa8] sm:$0xff]
        %v424 = vld [vmem:[%s408 + $0xb0] sm:$0xff]
        %v426 = vlaneseq
        %v427 = vshrl.u32 %v426, 7
        %v428 = vsub.s32 0, %v427
        %v429 = vrot.slane %v247, %v428
        %v431 = vmul.f32 %v409, %v429
        %v432 = vmul.f32 %v410, %v429
        %v433 = vmul.f32 %v411, %v429
        %v434 = vmul.f32 %v412, %v429
        %v435 = vmul.f32 %v413, %v429
        %v436 = vmul.f32 %v414, %v429
        %v437 = vmul.f32 %v415, %v429
        %v438 = vmul.f32 %v416, %v429
        %v439 = vmul.f32 %v417, %v429
        %v440 = vmul.f32 %v418, %v429
        %v441 = vmul.f32 %v419, %v429
        %v442 = vmul.f32 %v420, %v429
        %v443 = vmul.f32 %v421, %v429
        %v444 = vmul.f32 %v422, %v429
        %v445 = vmul.f32 %v423, %v429
        %v446 = vmul.f32 %v424, %v429
        %v447 = vadd.f32 %v390, %v431
        %v448 = vadd.f32 %v391, %v432
        %v449 = vadd.f32 %v392, %v433
        %v450 = vadd.f32 %v393, %v434
        %v451 = vadd.f32 %v394, %v435
        %v452 = vadd.f32 %v395, %v436
        %v453 = vadd.f32 %v396, %v437
        %v454 = vadd.f32 %v397, %v438
        %v455 = vadd.f32 %v398, %v439
        %v456 = vadd.f32 %v399, %v440
        %v457 = vadd.f32 %v400, %v441
        %v458 = vadd.f32 %v401, %v442
        %v459 = vadd.f32 %v402, %v443
        %v460 = vadd.f32 %v403, %v444
        %v461 = vadd.f32 %v404, %v445
        %v462 = vadd.f32 %v405, %v446
        %v463 = vld [vmem:[%s408 + $0x2] sm:$0xff]
        %v464 = vld [vmem:[%s408 + $0xa] sm:$0xff]
        %v465 = vld [vmem:[%s408 + $0x1a] sm:$0xff]
        %v466 = vld [vmem:[%s408 + $0x22] sm:$0xff]
        %v467 = vld [vmem:[%s408 + $0x32] sm:$0xff]
        %v468 = vld [vmem:[%s408 + $0x3a] sm:$0xff]
        %v469 = vld [vmem:[%s408 + $0x4a] sm:$0xff]
        %v470 = vld [vmem:[%s408 + $0x52] sm:$0xff]
        %v471 = vld [vmem:[%s408 + $0x62] sm:$0xff]
        %v472 = vld [vmem:[%s408 + $0x6a] sm:$0xff]
        %v473 = vld [vmem:[%s408 + $0x7a] sm:$0xff]
        %v474 = vld [vmem:[%s408 + $0x82] sm:$0xff]
        %v475 = vld [vmem:[%s408 + $0x92] sm:$0xff]
        %v476 = vld [vmem:[%s408 + $0x9a] sm:$0xff]
        %v477 = vld [vmem:[%s408 + $0xaa] sm:$0xff]
        %v478 = vld [vmem:[%s408 + $0xb2] sm:$0xff]
        %v480 = vlaneseq
        %v481 = vshrl.u32 %v480, 7
        %v482 = vsub.s32 0, %v481
        %v483 = vrot.slane %v249, %v482
        %v485 = vmul.f32 %v463, %v483
        %v486 = vmul.f32 %v464, %v483
        %v487 = vmul.f32 %v465, %v483
        %v488 = vmul.f32 %v466, %v483
        %v489 = vmul.f32 %v467, %v483
        %v490 = vmul.f32 %v468, %v483
        %v491 = vmul.f32 %v469, %v483
        %v492 = vmul.f32 %v470, %v483
        %v493 = vmul.f32 %v471, %v483
        %v494 = vmul.f32 %v472, %v483
        %v495 = vmul.f32 %v473, %v483
        %v496 = vmul.f32 %v474, %v483
        %v497 = vmul.f32 %v475, %v483
        %v498 = vmul.f32 %v476, %v483
        %v499 = vmul.f32 %v477, %v483
        %v500 = vmul.f32 %v478, %v483
        %v501 = vadd.f32 %v447, %v485
        %v502 = vadd.f32 %v448, %v486
        %v503 = vadd.f32 %v449, %v487
        %v504 = vadd.f32 %v450, %v488
        %v505 = vadd.f32 %v451, %v489
        %v506 = vadd.f32 %v452, %v490
        %v507 = vadd.f32 %v453, %v491
        %v508 = vadd.f32 %v454, %v492
        %v509 = vadd.f32 %v455, %v493
        %v510 = vadd.f32 %v456, %v494
        %v511 = vadd.f32 %v457, %v495
        %v512 = vadd.f32 %v458, %v496
        %v513 = vadd.f32 %v459, %v497
        %v514 = vadd.f32 %v460, %v498
        %v515 = vadd.f32 %v461, %v499
        %v516 = vadd.f32 %v462, %v500
        %v517 = vld [vmem:[%s408 + $0x4] sm:$0xff]
        %v518 = vld [vmem:[%s408 + $0xc] sm:$0xff]
        %v519 = vld [vmem:[%s408 + $0x1c] sm:$0xff]
        %v520 = vld [vmem:[%s408 + $0x24] sm:$0xff]
        %v521 = vld [vmem:[%s408 + $0x34] sm:$0xff]
        %v522 = vld [vmem:[%s408 + $0x3c] sm:$0xff]
        %v523 = vld [vmem:[%s408 + $0x4c] sm:$0xff]
        %v524 = vld [vmem:[%s408 + $0x54] sm:$0xff]
        %v525 = vld [vmem:[%s408 + $0x64] sm:$0xff]
        %v526 = vld [vmem:[%s408 + $0x6c] sm:$0xff]
        %v527 = vld [vmem:[%s408 + $0x7c] sm:$0xff]
        %v528 = vld [vmem:[%s408 + $0x84] sm:$0xff]
        %v529 = vld [vmem:[%s408 + $0x94] sm:$0xff]
        %v530 = vld [vmem:[%s408 + $0x9c] sm:$0xff]
        %v531 = vld [vmem:[%s408 + $0xac] sm:$0xff]
        %v532 = vld [vmem:[%s408 + $0xb4] sm:$0xff]
        %v534 = vlaneseq
        %v535 = vshrl.u32 %v534, 7
        %v536 = vsub.s32 0, %v535
        %v537 = vrot.slane %v251, %v536
        %v539 = vmul.f32 %v517, %v537
        %v540 = vmul.f32 %v518, %v537
        %v541 = vmul.f32 %v519, %v537
        %v542 = vmul.f32 %v520, %v537
        %v543 = vmul.f32 %v521, %v537
        %v544 = vmul.f32 %v522, %v537
        %v545 = vmul.f32 %v523, %v537
        %v546 = vmul.f32 %v524, %v537
        %v547 = vmul.f32 %v525, %v537
        %v548 = vmul.f32 %v526, %v537
        %v549 = vmul.f32 %v527, %v537
        %v550 = vmul.f32 %v528, %v537
        %v551 = vmul.f32 %v529, %v537
        %v552 = vmul.f32 %v530, %v537
        %v553 = vmul.f32 %v531, %v537
        %v554 = vmul.f32 %v532, %v537
        %v555 = vadd.f32 %v501, %v539
        %v556 = vadd.f32 %v502, %v540
        %v557 = vadd.f32 %v503, %v541
        %v558 = vadd.f32 %v504, %v542
        %v559 = vadd.f32 %v505, %v543
        %v560 = vadd.f32 %v506, %v544
        %v561 = vadd.f32 %v507, %v545
        %v562 = vadd.f32 %v508, %v546
        %v563 = vadd.f32 %v509, %v547
        %v564 = vadd.f32 %v510, %v548
        %v565 = vadd.f32 %v511, %v549
        %v566 = vadd.f32 %v512, %v550
        %v567 = vadd.f32 %v513, %v551
        %v568 = vadd.f32 %v514, %v552
        %v569 = vadd.f32 %v515, %v553
        %v570 = vadd.f32 %v516, %v554
        %s571 = sadd.s32 %s239, 4
        %s572 = smul.u32 %s571, 24
        %s573 = scalar_lea.vmem %s236, %s572
        %v574 = vld [vmem:[%s573] sm:$0xff]
        %v575 = vld [vmem:[%s573 + $0x8] sm:$0xff]
        %v576 = vld [vmem:[%s573 + $0x18] sm:$0xff]
        %v577 = vld [vmem:[%s573 + $0x20] sm:$0xff]
        %v578 = vld [vmem:[%s573 + $0x30] sm:$0xff]
        %v579 = vld [vmem:[%s573 + $0x38] sm:$0xff]
        %v580 = vld [vmem:[%s573 + $0x48] sm:$0xff]
        %v581 = vld [vmem:[%s573 + $0x50] sm:$0xff]
        %v582 = vld [vmem:[%s573 + $0x60] sm:$0xff]
        %v583 = vld [vmem:[%s573 + $0x68] sm:$0xff]
        %v584 = vld [vmem:[%s573 + $0x78] sm:$0xff]
        %v585 = vld [vmem:[%s573 + $0x80] sm:$0xff]
        %v586 = vld [vmem:[%s573 + $0x90] sm:$0xff]
        %v587 = vld [vmem:[%s573 + $0x98] sm:$0xff]
        %v588 = vld [vmem:[%s573 + $0xa8] sm:$0xff]
        %v589 = vld [vmem:[%s573 + $0xb0] sm:$0xff]
        %v591 = vlaneseq
        %v592 = vshrl.u32 %v591, 7
        %v593 = vsub.s32 0, %v592
        %v594 = vrot.slane %v253, %v593
        %v596 = vmul.f32 %v574, %v594
        %v597 = vmul.f32 %v575, %v594
        %v598 = vmul.f32 %v576, %v594
        %v599 = vmul.f32 %v577, %v594
        %v600 = vmul.f32 %v578, %v594
        %v601 = vmul.f32 %v579, %v594
        %v602 = vmul.f32 %v580, %v594
        %v603 = vmul.f32 %v581, %v594
        %v604 = vmul.f32 %v582, %v594
        %v605 = vmul.f32 %v583, %v594
        %v606 = vmul.f32 %v584, %v594
        %v607 = vmul.f32 %v585, %v594
        %v608 = vmul.f32 %v586, %v594
        %v609 = vmul.f32 %v587, %v594
        %v610 = vmul.f32 %v588, %v594
        %v611 = vmul.f32 %v589, %v594
        %v612 = vadd.f32 %v555, %v596
        %v613 = vadd.f32 %v556, %v597
        %v614 = vadd.f32 %v557, %v598
        %v615 = vadd.f32 %v558, %v599
        %v616 = vadd.f32 %v559, %v600
        %v617 = vadd.f32 %v560, %v601
        %v618 = vadd.f32 %v561, %v602
        %v619 = vadd.f32 %v562, %v603
        %v620 = vadd.f32 %v563, %v604
        %v621 = vadd.f32 %v564, %v605
        %v622 = vadd.f32 %v565, %v606
        %v623 = vadd.f32 %v566, %v607
        %v624 = vadd.f32 %v567, %v608
        %v625 = vadd.f32 %v568, %v609
        %v626 = vadd.f32 %v569, %v610
        %v627 = vadd.f32 %v570, %v611
        %v628 = vld [vmem:[%s573 + $0x2] sm:$0xff]
        %v629 = vld [vmem:[%s573 + $0xa] sm:$0xff]
        %v630 = vld [vmem:[%s573 + $0x1a] sm:$0xff]
        %v631 = vld [vmem:[%s573 + $0x22] sm:$0xff]
        %v632 = vld [vmem:[%s573 + $0x32] sm:$0xff]
        %v633 = vld [vmem:[%s573 + $0x3a] sm:$0xff]
        %v634 = vld [vmem:[%s573 + $0x4a] sm:$0xff]
        %v635 = vld [vmem:[%s573 + $0x52] sm:$0xff]
        %v636 = vld [vmem:[%s573 + $0x62] sm:$0xff]
        %v637 = vld [vmem:[%s573 + $0x6a] sm:$0xff]
        %v638 = vld [vmem:[%s573 + $0x7a] sm:$0xff]
        %v639 = vld [vmem:[%s573 + $0x82] sm:$0xff]
        %v640 = vld [vmem:[%s573 + $0x92] sm:$0xff]
        %v641 = vld [vmem:[%s573 + $0x9a] sm:$0xff]
        %v642 = vld [vmem:[%s573 + $0xaa] sm:$0xff]
        %v643 = vld [vmem:[%s573 + $0xb2] sm:$0xff]
        %v645 = vlaneseq
        %v646 = vshrl.u32 %v645, 7
        %v647 = vsub.s32 0, %v646
        %v648 = vrot.slane %v255, %v647
        %v650 = vmul.f32 %v628, %v648
        %v651 = vmul.f32 %v629, %v648
        %v652 = vmul.f32 %v630, %v648
        %v653 = vmul.f32 %v631, %v648
        %v654 = vmul.f32 %v632, %v648
        %v655 = vmul.f32 %v633, %v648
        %v656 = vmul.f32 %v634, %v648
        %v657 = vmul.f32 %v635, %v648
        %v658 = vmul.f32 %v636, %v648
        %v659 = vmul.f32 %v637, %v648
        %v660 = vmul.f32 %v638, %v648
        %v661 = vmul.f32 %v639, %v648
        %v662 = vmul.f32 %v640, %v648
        %v663 = vmul.f32 %v641, %v648
        %v664 = vmul.f32 %v642, %v648
        %v665 = vmul.f32 %v643, %v648
        %v666 = vadd.f32 %v612, %v650
        %v667 = vadd.f32 %v613, %v651
        %v668 = vadd.f32 %v614, %v652
        %v669 = vadd.f32 %v615, %v653
        %v670 = vadd.f32 %v616, %v654
        %v671 = vadd.f32 %v617, %v655
        %v672 = vadd.f32 %v618, %v656
        %v673 = vadd.f32 %v619, %v657
        %v674 = vadd.f32 %v620, %v658
        %v675 = vadd.f32 %v621, %v659
        %v676 = vadd.f32 %v622, %v660
        %v677 = vadd.f32 %v623, %v661
        %v678 = vadd.f32 %v624, %v662
        %v679 = vadd.f32 %v625, %v663
        %v680 = vadd.f32 %v626, %v664
        %v681 = vadd.f32 %v627, %v665
        %v682 = vld [vmem:[%s573 + $0x4] sm:$0xff]
        %v683 = vld [vmem:[%s573 + $0xc] sm:$0xff]
        %v684 = vld [vmem:[%s573 + $0x1c] sm:$0xff]
        %v685 = vld [vmem:[%s573 + $0x24] sm:$0xff]
        %v686 = vld [vmem:[%s573 + $0x34] sm:$0xff]
        %v687 = vld [vmem:[%s573 + $0x3c] sm:$0xff]
        %v688 = vld [vmem:[%s573 + $0x4c] sm:$0xff]
        %v689 = vld [vmem:[%s573 + $0x54] sm:$0xff]
        %v690 = vld [vmem:[%s573 + $0x64] sm:$0xff]
        %v691 = vld [vmem:[%s573 + $0x6c] sm:$0xff]
        %v692 = vld [vmem:[%s573 + $0x7c] sm:$0xff]
        %v693 = vld [vmem:[%s573 + $0x84] sm:$0xff]
        %v694 = vld [vmem:[%s573 + $0x94] sm:$0xff]
        %v695 = vld [vmem:[%s573 + $0x9c] sm:$0xff]
        %v696 = vld [vmem:[%s573 + $0xac] sm:$0xff]
        %v697 = vld [vmem:[%s573 + $0xb4] sm:$0xff]
        %v699 = vlaneseq
        %v700 = vshrl.u32 %v699, 7
        %v701 = vsub.s32 0, %v700
        %v702 = vrot.slane %v257, %v701
        %v704 = vmul.f32 %v682, %v702
        %v705 = vmul.f32 %v683, %v702
        %v706 = vmul.f32 %v684, %v702
        %v707 = vmul.f32 %v685, %v702
        %v708 = vmul.f32 %v686, %v702
        %v709 = vmul.f32 %v687, %v702
        %v710 = vmul.f32 %v688, %v702
        %v711 = vmul.f32 %v689, %v702
        %v712 = vmul.f32 %v690, %v702
        %v713 = vmul.f32 %v691, %v702
        %v714 = vmul.f32 %v692, %v702
        %v715 = vmul.f32 %v693, %v702
        %v716 = vmul.f32 %v694, %v702
        %v717 = vmul.f32 %v695, %v702
        %v718 = vmul.f32 %v696, %v702
        %v719 = vmul.f32 %v697, %v702
        %v720 = vadd.f32 %v666, %v704
        %v721 = vadd.f32 %v667, %v705
        %v722 = vadd.f32 %v668, %v706
        %v723 = vadd.f32 %v669, %v707
        %v724 = vadd.f32 %v670, %v708
        %v725 = vadd.f32 %v671, %v709
        %v726 = vadd.f32 %v672, %v710
        %v727 = vadd.f32 %v673, %v711
        %v728 = vadd.f32 %v674, %v712
        %v729 = vadd.f32 %v675, %v713
        %v730 = vadd.f32 %v676, %v714
        %v731 = vadd.f32 %v677, %v715
        %v732 = vadd.f32 %v678, %v716
        %v733 = vadd.f32 %v679, %v717
        %v734 = vadd.f32 %v680, %v718
        %v735 = vadd.f32 %v681, %v719
        %v737 = vlaneseq
        %v738 = vshrl.u32 %v737, 7
        %v739 = vsub.s32 0, %v738
        %v740 = vrot.slane %v240, %v739
        %v742 = vadd.f32 %v720, %v740
        %v743 = vadd.f32 %v721, %v740
        %v744 = vadd.f32 %v722, %v740
        %v745 = vadd.f32 %v723, %v740
        %v746 = vadd.f32 %v724, %v740
        %v747 = vadd.f32 %v725, %v740
        %v748 = vadd.f32 %v726, %v740
        %v749 = vadd.f32 %v727, %v740
        %v750 = vadd.f32 %v728, %v740
        %v751 = vadd.f32 %v729, %v740
        %v752 = vadd.f32 %v730, %v740
        %v753 = vadd.f32 %v731, %v740
        %v754 = vadd.f32 %v732, %v740
        %v755 = vadd.f32 %v733, %v740
        %v756 = vadd.f32 %v734, %v740
        %v757 = vadd.f32 %v735, %v740
        %v758 = vpack.c.bf16 %v743, %v742
        %v759 = vpack.c.bf16 %v745, %v744
        %v760 = vpack.c.bf16 %v747, %v746
        %v761 = vpack.c.bf16 %v749, %v748
        %v762 = vpack.c.bf16 %v751, %v750
        %v763 = vpack.c.bf16 %v753, %v752
        %v764 = vpack.c.bf16 %v755, %v754
        %v765 = vpack.c.bf16 %v757, %v756
        %766 = vst [vmem:[#allocation2] sm:$0xff] %v758
        %767 = vst [vmem:[#allocation2 + $0x8] sm:$0xff] %v759
        %768 = vst [vmem:[#allocation2 + $0x10] sm:$0xff] %v760
        %769 = vst [vmem:[#allocation2 + $0x18] sm:$0xff] %v761
        %770 = vst [vmem:[#allocation2 + $0x20] sm:$0xff] %v762
        %771 = vst [vmem:[#allocation2 + $0x28] sm:$0xff] %v763
        %772 = vst [vmem:[#allocation2 + $0x30] sm:$0xff] %v764
        %773 = vst [vmem:[#allocation2 + $0x38] sm:$0xff] %v765
        %v774 = vld [vmem:[#allocation2] sm:$0xff]
        %v775 = vld [vmem:[#allocation2 + $0x8] sm:$0xff]
        %v776 = vld [vmem:[#allocation2 + $0x10] sm:$0xff]
        %v777 = vld [vmem:[#allocation2 + $0x18] sm:$0xff]
        %v778 = vld [vmem:[#allocation2 + $0x20] sm:$0xff]
        %v779 = vld [vmem:[#allocation2 + $0x28] sm:$0xff]
        %v780 = vld [vmem:[#allocation2 + $0x30] sm:$0xff]
        %v781 = vld [vmem:[#allocation2 + $0x38] sm:$0xff]
        %v782 = vld [vmem:[%s3] sm:$0xf]
        %v783 = vld [vmem:[%s3 + $0x4] sm:$0xf]
        %v784 = vld [vmem:[%s3 + $0x8] sm:$0xf]
        %v785 = vld [vmem:[%s3 + $0xc] sm:$0xf]
        %v786 = vld [vmem:[%s3 + $0x10] sm:$0xf]
        %v787 = vld [vmem:[%s3 + $0x14] sm:$0xf]
        %v788 = vld [vmem:[%s3 + $0x18] sm:$0xf]
        %v789 = vld [vmem:[%s3 + $0x1c] sm:$0xf]
        %v790 = vld [vmem:[%s3 + $0x20] sm:$0xf]
        %v791 = vld [vmem:[%s3 + $0x24] sm:$0xf]
        %v792 = vld [vmem:[%s3 + $0x28] sm:$0xf]
        %v793 = vld [vmem:[%s3 + $0x2c] sm:$0xf]
        %v794 = vld [vmem:[%s3 + $0x30] sm:$0xf]
        %v795 = vld [vmem:[%s3 + $0x34] sm:$0xf]
        %v796 = vld [vmem:[%s3 + $0x38] sm:$0xf]
        %v797 = vld [vmem:[%s3 + $0x3c] sm:$0xf]
        %v798 = vld [vmem:[%s4] sm:$0x1]
        %v800 = vlaneseq
        %v801 = vshrl.u32 %v800, 7
        %v802 = vsub.s32 0, %v801
        %v803 = vrot.slane %v798, %v802
        %v821 = vunpack.c.l.b16 %v782
        %v822 = vunpack.c.l.b16 %v783
        %v823 = vunpack.c.l.b16 %v784
        %v824 = vunpack.c.l.b16 %v785
        %v825 = vunpack.c.l.b16 %v786
        %v826 = vunpack.c.l.b16 %v787
        %v827 = vunpack.c.l.b16 %v788
        %v828 = vunpack.c.l.b16 %v789
        %v829 = vunpack.c.l.b16 %v790
        %v830 = vunpack.c.l.b16 %v791
        %v831 = vunpack.c.l.b16 %v792
        %v832 = vunpack.c.l.b16 %v793
        %v833 = vunpack.c.l.b16 %v794
        %v834 = vunpack.c.l.b16 %v795
        %v835 = vunpack.c.l.b16 %v796
        %v836 = vunpack.c.l.b16 %v797
        %v837 = vpack.c.b16 %v822, %v821
        %v838 = vpack.c.b16 %v824, %v823
        %v839 = vpack.c.b16 %v826, %v825
        %v840 = vpack.c.b16 %v828, %v827
        %v841 = vpack.c.b16 %v830, %v829
        %v842 = vpack.c.b16 %v832, %v831
        %v843 = vpack.c.b16 %v834, %v833
        %v844 = vpack.c.b16 %v836, %v835
        %853 = vmatprep.subr.bf16.mxu0 0
        %854 = vmatpush1.bf16.msra.mxu0 %v837
        %855 = vmatprep.subr.bf16.mxu0 0
        %856 = vmatpush1.bf16.msra.mxu0 %v838
        %857 = vmatprep.subr.bf16.mxu0 0
        %858 = vmatpush1.bf16.msra.mxu0 %v839
        %859 = vmatprep.subr.bf16.mxu0 0
        %860 = vmatpush1.bf16.msra.mxu0 %v840
        %861 = vmatprep.subr.bf16.mxu0 0
        %862 = vmatpush1.bf16.msra.mxu0 %v841
        %863 = vmatprep.subr.bf16.mxu0 0
        %864 = vmatpush1.bf16.msra.mxu0 %v842
        %865 = vmatprep.subr.bf16.mxu0 0
        %866 = vmatpush1.bf16.msra.mxu0 %v843
        %867 = vmatprep.subr.bf16.mxu0 0
        %868 = vmatpush1.bf16.msra.mxu0 %v844
        %869 = vmatprep.subr.bf16.mxu0 0
        %870 = vmatpush1.bf16.msra.mxu0 0
        %871 = vmatprep.subr.bf16.mxu0 0
        %872 = vmatpush1.bf16.msra.mxu0 0
        %873 = vmatprep.subr.bf16.mxu0 0
        %874 = vmatpush1.bf16.msra.mxu0 0
        %875 = vmatprep.subr.bf16.mxu0 0
        %876 = vmatpush1.bf16.msra.mxu0 0
        %877 = vmatprep.subr.bf16.mxu0 0
        %878 = vmatpush1.bf16.msra.mxu0 0
        %879 = vmatprep.subr.bf16.mxu0 0
        %880 = vmatpush1.bf16.msra.mxu0 0
        %881 = vmatprep.subr.bf16.mxu0 0
        %882 = vmatpush1.bf16.msra.mxu0 0
        %883 = vmatprep.subr.bf16.mxu0 0
        %884 = vmatpush1.bf16.msra.mxu0 0
        %885 = vmatprep.mubr.bf16.mxu0 0
        %886 = vmatmul.mubr.bf16.gmra.mrb[0].mxu0 %v774
        %v887 = vpop.f32.mrb[0].mxu0
        %v888 = vadd.f32 %v803, %v887
        %v889 = vpop.f32.mrb[0].mxu0
        %v890 = vpop.f32.mrb[0].mxu0
        %v891 = vadd.f32 %v803, %v890
        %v892 = vpop.f32.mrb[0].mxu0
        %893 = vmatprep.mubr.bf16.mxu0 0
        %894 = vmatmul.mubr.bf16.gmra.mrb[0].mxu0 %v775
        %v895 = vpop.f32.mrb[0].mxu0
        %v896 = vadd.f32 %v803, %v895
        %v897 = vpop.f32.mrb[0].mxu0
        %v898 = vpop.f32.mrb[0].mxu0
        %v899 = vadd.f32 %v803, %v898
        %v900 = vpop.f32.mrb[0].mxu0
        %901 = vmatprep.mubr.bf16.mxu0 0
        %902 = vmatmul.mubr.bf16.gmra.mrb[0].mxu0 %v776
        %v903 = vpop.f32.mrb[0].mxu0
        %v904 = vadd.f32 %v803, %v903
        %v905 = vpop.f32.mrb[0].mxu0
        %v906 = vpop.f32.mrb[0].mxu0
        %v907 = vadd.f32 %v803, %v906
        %v908 = vpop.f32.mrb[0].mxu0
        %909 = vmatprep.mubr.bf16.mxu0 0
        %910 = vmatmul.mubr.bf16.gmra.mrb[0].mxu0 %v777
        %v911 = vpop.f32.mrb[0].mxu0
        %v912 = vadd.f32 %v803, %v911
        %v913 = vpop.f32.mrb[0].mxu0
        %v914 = vpop.f32.mrb[0].mxu0
        %v915 = vadd.f32 %v803, %v914
        %v916 = vpop.f32.mrb[0].mxu0
        %917 = vmatprep.mubr.bf16.mxu0 0
        %918 = vmatmul.mubr.bf16.gmra.mrb[0].mxu0 %v778
        %v919 = vpop.f32.mrb[0].mxu0
        %v920 = vadd.f32 %v803, %v919
        %v921 = vpop.f32.mrb[0].mxu0
        %v922 = vpop.f32.mrb[0].mxu0
        %v923 = vadd.f32 %v803, %v922
        %v924 = vpop.f32.mrb[0].mxu0
        %925 = vmatprep.mubr.bf16.mxu0 0
        %926 = vmatmul.mubr.bf16.gmra.mrb[0].mxu0 %v779
        %v927 = vpop.f32.mrb[0].mxu0
        %v928 = vadd.f32 %v803, %v927
        %v929 = vpop.f32.mrb[0].mxu0
        %v930 = vpop.f32.mrb[0].mxu0
        %v931 = vadd.f32 %v803, %v930
        %v932 = vpop.f32.mrb[0].mxu0
        %933 = vmatprep.mubr.bf16.mxu0 0
        %934 = vmatmul.mubr.bf16.gmra.mrb[0].mxu0 %v780
        %v935 = vpop.f32.mrb[0].mxu0
        %v936 = vadd.f32 %v803, %v935
        %v937 = vpop.f32.mrb[0].mxu0
        %v938 = vpop.f32.mrb[0].mxu0
        %v939 = vadd.f32 %v803, %v938
        %v940 = vpop.f32.mrb[0].mxu0
        %941 = vmatprep.mubr.bf16.mxu0 0
        %942 = vmatmul.mubr.bf16.gmra.mrb[0].mxu0 %v781
        %v943 = vpop.f32.mrb[0].mxu0
        %v944 = vadd.f32 %v803, %v943
        %v945 = vpop.f32.mrb[0].mxu0
        %v946 = vpop.f32.mrb[0].mxu0
        %v947 = vadd.f32 %v803, %v946
        %v948 = vpop.f32.mrb[0].mxu0
        %949 = vdwg.mxu0
        %950 = vst [vmem:[%s231] sm:$0xff] %v888
        %951 = vst [vmem:[%s231 + $0x8] sm:$0xff] %v891
        %952 = vst [vmem:[%s231 + $0x10] sm:$0xff] %v896
        %953 = vst [vmem:[%s231 + $0x18] sm:$0xff] %v899
        %954 = vst [vmem:[%s231 + $0x20] sm:$0xff] %v904
        %955 = vst [vmem:[%s231 + $0x28] sm:$0xff] %v907
        %956 = vst [vmem:[%s231 + $0x30] sm:$0xff] %v912
        %957 = vst [vmem:[%s231 + $0x38] sm:$0xff] %v915
        %958 = vst [vmem:[%s231 + $0x40] sm:$0xff] %v920
        %959 = vst [vmem:[%s231 + $0x48] sm:$0xff] %v923
        %960 = vst [vmem:[%s231 + $0x50] sm:$0xff] %v928
        %961 = vst [vmem:[%s231 + $0x58] sm:$0xff] %v931
        %962 = vst [vmem:[%s231 + $0x60] sm:$0xff] %v936
        %963 = vst [vmem:[%s231 + $0x68] sm:$0xff] %v939
        %964 = vst [vmem:[%s231 + $0x70] sm:$0xff] %v944
        %965 = vst [vmem:[%s231 + $0x78] sm:$0xff] %v947
        %s966 = sand.u32 %s151, 1
        %s967 = scalar_lea.sflag [#allocation4], %s966
        %s968 = sand.u32 %s151, 1
        %s969 = smul.addr %s968, 128
        %s970 = scalar_lea.vmem [#allocation3], %s969
        // Predicated region
        $region41: #{tpu_custom_call.1} parent=39 // pred_check
          %p971 = pneg %p161
        $region42: #{tpu_custom_call.1} parent=39 // pred_check_branch
          %973 = sbr.rel (%p971) target = $region44
        $region43: #{tpu_custom_call.1} parent=39 // pred_region
          %s974 = smul.u32 8, %s24
          %s976 = ssub.s32 2048, 2048
          %977 = vsyncadd %s967, %s976
          %s978 = smul.addr %s974, 2
          %s979 = smul.addr %s23, 32
          %s980 = sadd.s32 %s978, %s979
          %s981 = smul.addr %s980, 128
          %s982 = scalar_lea.hbm %s5, %s981
          %s983 = sshll.u32 %s970, 4
          %s984 = int_to_ptr.vmem [resolvable:$true] %s983
          %989 = dma.vmem_to_hbm [thread:$0]  %s984, 2048, %s982, %s967, 128, 128, 8
        $region44: #{tpu_custom_call.1} parent=39 // pred_fallthru
          _
      $region40: #{tpu_custom_call.1} parent=5 // pred_fallthru
        _
      %p990 = scmp.le.s32.totalorder 2, %s14
      // Predicated region
      $region45: #{tpu_custom_call.1} parent=5 // pred_check
        %p991 = pneg %p990
      $region46: #{tpu_custom_call.1} parent=5 // pred_check_branch
        %993 = sbr.rel (%p991) target = $region48
      $region47: #{tpu_custom_call.1} parent=5 // pred_region
        %s994 = ssub.s32 %s14, 2
        // Predicated region
        $region49: #{tpu_custom_call.1} parent=47 // pred_check
          %p995 = pneg %p167
        $region50: #{tpu_custom_call.1} parent=47 // pred_check_branch
          %997 = sbr.rel (%p995) target = $region52
        $region51: #{tpu_custom_call.1} parent=47 // pred_region
          %s998 = sand.u32 %s152, 1
          %s999 = scalar_lea.sflag [#allocation4], %s998
          %s1000 = sand.u32 %s152, 1
          %s1001 = smul.addr %s1000, 128
          %s1002 = scalar_lea.vmem [#allocation3], %s1001
          %1003 = dma.done %s999, 2048
        $region52: #{tpu_custom_call.1} parent=47 // pred_fallthru
          _
      $region48: #{tpu_custom_call.1} parent=5 // pred_fallthru
        _
    $region6: #{tpu_custom_call.1} parent=1 // loop_footer
      %s18 = sadd.s32 1, %s14
    $region7: #{tpu_custom_call.1} parent=1 // loop_footer_branch
      %13 = sbr.rel target = $region3
    $region8: #{tpu_custom_call.1} parent=1 // loop_exit
      _
    %1004 = vsyncpa [#allocation4], 1
    %s1005 = scalar_lea.sflag [#allocation4], 1
    %1006 = vsyncpa %s1005, 1

</llo_original>
